<compile_context>
chip_gen: v5e
topology: v5e:2x2
jax: 0.10.0
libtpu: 0.0.40
codegen_flags: <defaults>
</compile_context>

<pallas_src>
import functools

import jax
import jax.numpy as jnp
from jax.experimental import pallas as pl
from jax.experimental.pallas import tpu as pltpu


def _round_up(n: int, m: int) -> int:
    return ((n + m - 1) // m) * m


def _vmem_budget_cap() -> int:
    """Generation-aware ceiling for vmem_limit_bytes (capacity - headroom)."""
    cap = 128 << 20
    try:
        info = pltpu.get_tpu_info()
        cap = int(getattr(info, "vmem_capacity_bytes", cap)) or cap
    except Exception:
        pass
    # Leave ~16 MiB headroom for Mosaic internal scratch; never ask > ~100 MiB.
    return max(min(cap - (16 << 20), 100 << 20), 16 << 20)


def _mlp_kernel(*refs, num_skip_layers):
    """Whole Baseline MLP for one batch tile; weights fully resident in VMEM.

    refs = (x, w1, b1, [wa_i, ba_i, wb_i, bb_i] * L, wl, bl, out)
    """
    x_ref, w1_ref, b1_ref = refs[0], refs[1], refs[2]
    n_blk = 4 * num_skip_layers
    blk = refs[3:3 + n_blk]
    wl_ref, bl_ref = refs[3 + n_blk], refs[4 + n_blk]
    o_ref = refs[5 + n_blk]

    cdt = w1_ref.dtype                      # matmul compute dtype (bf16 or f32)

    # first_layer + ReLU (f32 accumulation)
    h = jnp.dot(x_ref[...], w1_ref[...], preferred_element_type=jnp.float32)
    h = jnp.maximum(h + b1_ref[...], 0.0)

    # resnet_block: statically unrolled residual blocks
    for i in range(num_skip_layers):
        wa_ref, ba_ref, wb_ref, bb_ref = blk[4 * i:4 * i + 4]
        t = jnp.dot(h.astype(cdt), wa_ref[...], preferred_element_type=jnp.float32)
        t = jnp.maximum(t + ba_ref[...], 0.0)
        t = jnp.dot(t.astype(cdt), wb_ref[...], preferred_element_type=jnp.float32)
        t = t + bb_ref[...]
        h = jnp.maximum(t + h, 0.0)

    # last_layer (no activation)
    out = jnp.dot(h.astype(cdt), wl_ref[...], preferred_element_type=jnp.float32)
    o_ref[...] = (out + bl_ref[...]).astype(o_ref.dtype)


def baseline_forward(X, Z, params, *, num_skip_layers,
                     batch_tile=256, compute_dtype=jnp.bfloat16,
                     out_dtype=jnp.float32, lane_pad=128):
    """X, Z: (B, num_markers, 3) float32. Returns (B, num_joints*3*4) out_dtype.

    lane_pad: keep 128 for small dims; bump to 256 on v6e/v7x when
    hidden/output are large multiples of 256 candidates (256-wide MXU).
    """
    w1, b1, wa, ba, wb, bb, wl, bl = params
    B = X.shape[0]
    input_size = w1.shape[0]
    hidden = w1.shape[1]
    output_size = wl.shape[1]
    cdt = compute_dtype

    # Lane-dense padded sizes -> unmasked loads/stores, full-width MXU passes.
    in_p = _round_up(input_size, lane_pad)
    hid_p = _round_up(hidden, lane_pad)
    out_p = _round_up(output_size, lane_pad)
    dh, dout = hid_p - hidden, out_p - output_size

    # --- Input glue -----------------------------------------------------------
    # torch: x = cat((X[...,None], Z[...,None]), -1).view(-1, input_size)
    #          = elementwise interleave [x0, z0, x1, z1, ...]
    # We feed concat(Xflat, Zflat) instead and absorb the interleave into a
    # one-time row permutation of W1 (zero runtime cost on the input side).
    x = jnp.concatenate([X.reshape(B, -1), Z.reshape(B, -1)], axis=-1)
    w1_eff = jnp.concatenate([w1[0::2], w1[1::2]], axis=0)   # (input_size, hidden)

    # Effective batch tile: keep >= 2 grid steps when B > 8 (both v7x TCs get
    # work; also avoids excess zero-row padding), tile stays a sublane multiple.
    tb = batch_tile
    if B > 8:
        tb = min(tb, _round_up(-(-B // 2), 8))
    tb = max(tb, 8)
    Bp = _round_up(max(B, tb), tb)
    grid = (Bp // tb,)

    # Pad + cast the input once in the wrapper (kernel-side cast is a no-op).
    x = jnp.pad(x, ((0, Bp - B), (0, in_p - input_size))).astype(cdt)

    # Padded / cast parameters (biases stay f32 for the accumulation adds).
    w1p = jnp.pad(w1_eff, ((0, in_p - input_size), (0, dh))).astype(cdt)
    b1p = jnp.pad(b1, ((0, 0), (0, dh))).astype(jnp.float32)
    layer_consts = []
    for i in range(num_skip_layers):        # per-layer 2-D arrays (no 3-D slicing)
        layer_consts += [
            jnp.pad(wa[i], ((0, dh), (0, dh))).astype(cdt),
            jnp.pad(ba[i], ((0, 0), (0, dh))).astype(jnp.float32),
            jnp.pad(wb[i], ((0, dh), (0, dh))).astype(cdt),
            jnp.pad(bb[i], ((0, 0), (0, dh))).astype(jnp.float32),
        ]
    wlp = jnp.pad(wl, ((0, dh), (0, dout))).astype(cdt)
    blp = jnp.pad(bl, ((0, 0), (0, dout))).astype(jnp.float32)
    consts = [w1p, b1p] + layer_consts + [wlp, blp]

    kernel = functools.partial(_mlp_kernel, num_skip_layers=num_skip_layers)

    weight_bytes = sum(int(a.size) * a.dtype.itemsize for a in consts)
    io_bytes = tb * in_p * jnp.dtype(cdt).itemsize \
        + tb * out_p * jnp.dtype(out_dtype).itemsize
    act_bytes = 6 * tb * hid_p * 4
    cap_budget = _vmem_budget_cap()

    flops = 2 * Bp * (in_p * hid_p
                      + num_skip_layers * 2 * hid_p * hid_p
                      + hid_p * out_p)
    bytes_accessed = (int(x.size) * x.dtype.itemsize
                      + Bp * out_p * jnp.dtype(out_dtype).itemsize
                      + weight_bytes)

    def _build_and_run(single_buffer_weights: bool):
        spec_kwargs = {}
        if single_buffer_weights:
            # Constant index_map across the grid -> the second pipeline buffer
            # is pure waste; request a single resident buffer.
            spec_kwargs = dict(pipeline_mode=pl.Buffered(1))

        def full(shape):
            return pl.BlockSpec(shape, lambda i, _n=len(shape): (0,) * _n,
                                **spec_kwargs)

        weight_mult = 1 if single_buffer_weights else 2
        need = weight_mult * weight_bytes + 2 * io_bytes + act_bytes + (4 << 20)
        vmem_limit = int(min(max(need, 32 << 20), cap_budget))

        in_specs = [pl.BlockSpec((tb, in_p), lambda i: (i, 0))]
        in_specs += [full(a.shape) for a in consts]

        return pl.pallas_call(
            kernel,
            out_shape=jax.ShapeDtypeStruct((Bp, out_p), out_dtype),
            grid=grid,
            in_specs=in_specs,
            out_specs=pl.BlockSpec((tb, out_p), lambda i: (i, 0)),
            compiler_params=pltpu.CompilerParams(
                dimension_semantics=("parallel",),
                vmem_limit_bytes=vmem_limit),
            cost_estimate=pl.CostEstimate(flops=flops, transcendentals=0,
                                          bytes_accessed=bytes_accessed),
        )(x, *consts)

    try:
        out = _build_and_run(True)
    except Exception:
        # Fallback: default double-buffered weight specs (always supported).
        out = _build_and_run(False)

    return out[:B, :output_size]


def init_params(key, num_markers, num_joints, hidden_size, num_skip_layers):
    input_size = num_markers * 3 * 2
    output_size = num_joints * 3 * 4
    ks = jax.random.split(key, 8)
    s = 0.05
    w1 = s * jax.random.normal(ks[0], (input_size, hidden_size), jnp.float32)
    b1 = s * jax.random.normal(ks[1], (1, hidden_size), jnp.float32)
    wa = s * jax.random.normal(ks[2], (num_skip_layers, hidden_size, hidden_size), jnp.float32)
    ba = s * jax.random.normal(ks[3], (num_skip_layers, 1, hidden_size), jnp.float32)
    wb = s * jax.random.normal(ks[4], (num_skip_layers, hidden_size, hidden_size), jnp.float32)
    bb = s * jax.random.normal(ks[5], (num_skip_layers, 1, hidden_size), jnp.float32)
    wl = s * jax.random.normal(ks[6], (hidden_size, output_size), jnp.float32)
    bl = s * jax.random.normal(ks[7], (1, output_size), jnp.float32)
    return (w1, b1, wa, ba, wb, bb, wl, bl)


def reference_forward(X, Z, params, *, num_skip_layers):
    """Pure-JAX reference mirroring the PyTorch module (use_svd=False)."""
    w1, b1, wa, ba, wb, bb, wl, bl = params
    B = X.shape[0]
    # torch-style interleave of X and Z (ground truth for the W1 permutation).
    x = jnp.stack([X.reshape(B, -1), Z.reshape(B, -1)], axis=-1).reshape(B, -1)
    h = jnp.maximum(x @ w1 + b1, 0.0)
    for i in range(num_skip_layers):
        t = jnp.maximum(h @ wa[i] + ba[i], 0.0)
        t = t @ wb[i] + bb[i]
        h = jnp.maximum(t + h, 0.0)
    return h @ wl + bl


if __name__ == "__main__":
    # Small, module-consistent shapes (batch deliberately NOT a multiple of the
    # tile so the padding path and a grid of length >= 2 are exercised).
    num_markers = 8          # input_size  = 8*3*2 = 48
    num_joints = 4           # output_size = 4*3*4 = 48
    hidden_size = 32
    num_skip_layers = 2
    batch = 200              # effective tile 104 -> Bp = 208, grid = 2

    key = jax.random.PRNGKey(0)
    kx, kz, kp = jax.random.split(key, 3)
    X = jax.random.normal(kx, (batch, num_markers, 3), jnp.float32)
    Z = jax.random.normal(kz, (batch, num_markers, 3), jnp.float32)
    params = init_params(kp, num_markers, num_joints, hidden_size, num_skip_layers)

    ref = reference_forward(X, Z, params, num_skip_layers=num_skip_layers)

    # f32 compute path: tight check against the pure-JAX reference.
    out_f32 = baseline_forward(X, Z, params, num_skip_layers=num_skip_layers,
                               compute_dtype=jnp.float32)
    out_f32 = jax.block_until_ready(out_f32)
    assert out_f32.shape == (batch, num_joints * 3 * 4), out_f32.shape
    assert jnp.allclose(out_f32, ref, atol=1e-4, rtol=1e-4), "f32 mismatch vs reference"

    # bf16 compute path (performance default): looser tolerance.
    out_bf16 = baseline_forward(X, Z, params, num_skip_layers=num_skip_layers,
                                compute_dtype=jnp.bfloat16)
    out_bf16 = jax.block_until_ready(out_bf16)
    assert out_bf16.shape == (batch, num_joints * 3 * 4), out_bf16.shape
    assert jnp.allclose(out_bf16, ref, atol=5e-2, rtol=5e-2), "bf16 mismatch vs reference"

    print("KERNEL_OK")
</pallas_src>

<mosaic_0001>
module attributes {stable_mosaic.version = 11 : i64} {
  func.func @_mlp_kernel(%arg0: i32, %arg1: memref<104x128xf32, #tpu.memory_space<vmem>>, %arg2: memref<128x128xf32, #tpu.memory_space<vmem>>, %arg3: memref<1x128xf32, #tpu.memory_space<vmem>>, %arg4: memref<128x128xf32, #tpu.memory_space<vmem>>, %arg5: memref<1x128xf32, #tpu.memory_space<vmem>>, %arg6: memref<128x128xf32, #tpu.memory_space<vmem>>, %arg7: memref<1x128xf32, #tpu.memory_space<vmem>>, %arg8: memref<128x128xf32, #tpu.memory_space<vmem>>, %arg9: memref<1x128xf32, #tpu.memory_space<vmem>>, %arg10: memref<128x128xf32, #tpu.memory_space<vmem>>, %arg11: memref<1x128xf32, #tpu.memory_space<vmem>>, %arg12: memref<128x128xf32, #tpu.memory_space<vmem>>, %arg13: memref<1x128xf32, #tpu.memory_space<vmem>>, %arg14: memref<104x128xf32, #tpu.memory_space<vmem>>) attributes {dimension_semantics = [#tpu.dimension_semantics<parallel>], iteration_bounds = array<i64: 2>, scalar_prefetch = 0 : i64, scratch_operands = 0 : i64, tpu.core_type = #tpu.core_type<tc>, window_params = [{transform_indices = @transform_0, window_bounds = array<i64: 104, 128>}, {pipeline_mode = #tpu.pipeline_mode<synchronous>, transform_indices = @transform_1, window_bounds = array<i64: 128, 128>}, {pipeline_mode = #tpu.pipeline_mode<synchronous>, transform_indices = @transform_2, window_bounds = array<i64: 1, 128>}, {pipeline_mode = #tpu.pipeline_mode<synchronous>, transform_indices = @transform_3, window_bounds = array<i64: 128, 128>}, {pipeline_mode = #tpu.pipeline_mode<synchronous>, transform_indices = @transform_4, window_bounds = array<i64: 1, 128>}, {pipeline_mode = #tpu.pipeline_mode<synchronous>, transform_indices = @transform_5, window_bounds = array<i64: 128, 128>}, {pipeline_mode = #tpu.pipeline_mode<synchronous>, transform_indices = @transform_6, window_bounds = array<i64: 1, 128>}, {pipeline_mode = #tpu.pipeline_mode<synchronous>, transform_indices = @transform_7, window_bounds = array<i64: 128, 128>}, {pipeline_mode = #tpu.pipeline_mode<synchronous>, transform_indices = @transform_8, window_bounds = array<i64: 1, 128>}, {pipeline_mode = #tpu.pipeline_mode<synchronous>, transform_indices = @transform_9, window_bounds = array<i64: 128, 128>}, {pipeline_mode = #tpu.pipeline_mode<synchronous>, transform_indices = @transform_10, window_bounds = array<i64: 1, 128>}, {pipeline_mode = #tpu.pipeline_mode<synchronous>, transform_indices = @transform_11, window_bounds = array<i64: 128, 128>}, {pipeline_mode = #tpu.pipeline_mode<synchronous>, transform_indices = @transform_12, window_bounds = array<i64: 1, 128>}, {transform_indices = @transform_13, window_bounds = array<i64: 104, 128>}]} {
    %c0 = arith.constant 0 : index
    %c0_0 = arith.constant 0 : index
    %0 = vector.load %arg1[%c0, %c0_0] : memref<104x128xf32, #tpu.memory_space<vmem>>, vector<104x128xf32>
    %c0_1 = arith.constant 0 : index
    %c0_2 = arith.constant 0 : index
    %1 = vector.load %arg2[%c0_1, %c0_2] : memref<128x128xf32, #tpu.memory_space<vmem>>, vector<128x128xf32>
    %cst = arith.constant dense<0.000000e+00> : vector<104x128xf32>
    %2 = tpu.matmul %0, %1, %cst {dimension_numbers = #tpu.dot_dimension_numbers<[1], [0], [0], [1], [0, 0, 1, 1], [], []>} : vector<104x128xf32>, vector<128x128xf32>, vector<104x128xf32> -> vector<104x128xf32>
    %c0_3 = arith.constant 0 : index
    %c0_4 = arith.constant 0 : index
    %3 = vector.load %arg3[%c0_3, %c0_4] : memref<1x128xf32, #tpu.memory_space<vmem>>, vector<1x128xf32>
    %4 = vector.broadcast %3 : vector<1x128xf32> to vector<104x128xf32>
    %5 = arith.addf %2, %4 : vector<104x128xf32>
    %cst_5 = arith.constant 0.000000e+00 : f32
    %6 = vector.broadcast %cst_5 : f32 to vector<104x128xf32>
    %7 = arith.maximumf %5, %6 : vector<104x128xf32>
    %c0_6 = arith.constant 0 : index
    %c0_7 = arith.constant 0 : index
    %8 = vector.load %arg4[%c0_6, %c0_7] : memref<128x128xf32, #tpu.memory_space<vmem>>, vector<128x128xf32>
    %cst_8 = arith.constant dense<0.000000e+00> : vector<104x128xf32>
    %9 = tpu.matmul %7, %8, %cst_8 {dimension_numbers = #tpu.dot_dimension_numbers<[1], [0], [0], [1], [0, 0, 1, 1], [], []>} : vector<104x128xf32>, vector<128x128xf32>, vector<104x128xf32> -> vector<104x128xf32>
    %c0_9 = arith.constant 0 : index
    %c0_10 = arith.constant 0 : index
    %10 = vector.load %arg5[%c0_9, %c0_10] : memref<1x128xf32, #tpu.memory_space<vmem>>, vector<1x128xf32>
    %11 = vector.broadcast %10 : vector<1x128xf32> to vector<104x128xf32>
    %12 = arith.addf %9, %11 : vector<104x128xf32>
    %cst_11 = arith.constant 0.000000e+00 : f32
    %13 = vector.broadcast %cst_11 : f32 to vector<104x128xf32>
    %14 = arith.maximumf %12, %13 : vector<104x128xf32>
    %c0_12 = arith.constant 0 : index
    %c0_13 = arith.constant 0 : index
    %15 = vector.load %arg6[%c0_12, %c0_13] : memref<128x128xf32, #tpu.memory_space<vmem>>, vector<128x128xf32>
    %cst_14 = arith.constant dense<0.000000e+00> : vector<104x128xf32>
    %16 = tpu.matmul %14, %15, %cst_14 {dimension_numbers = #tpu.dot_dimension_numbers<[1], [0], [0], [1], [0, 0, 1, 1], [], []>} : vector<104x128xf32>, vector<128x128xf32>, vector<104x128xf32> -> vector<104x128xf32>
    %c0_15 = arith.constant 0 : index
    %c0_16 = arith.constant 0 : index
    %17 = vector.load %arg7[%c0_15, %c0_16] : memref<1x128xf32, #tpu.memory_space<vmem>>, vector<1x128xf32>
    %18 = vector.broadcast %17 : vector<1x128xf32> to vector<104x128xf32>
    %19 = arith.addf %16, %18 : vector<104x128xf32>
    %20 = arith.addf %19, %7 : vector<104x128xf32>
    %cst_17 = arith.constant 0.000000e+00 : f32
    %21 = vector.broadcast %cst_17 : f32 to vector<104x128xf32>
    %22 = arith.maximumf %20, %21 : vector<104x128xf32>
    %c0_18 = arith.constant 0 : index
    %c0_19 = arith.constant 0 : index
    %23 = vector.load %arg8[%c0_18, %c0_19] : memref<128x128xf32, #tpu.memory_space<vmem>>, vector<128x128xf32>
    %cst_20 = arith.constant dense<0.000000e+00> : vector<104x128xf32>
    %24 = tpu.matmul %22, %23, %cst_20 {dimension_numbers = #tpu.dot_dimension_numbers<[1], [0], [0], [1], [0, 0, 1, 1], [], []>} : vector<104x128xf32>, vector<128x128xf32>, vector<104x128xf32> -> vector<104x128xf32>
    %c0_21 = arith.constant 0 : index
    %c0_22 = arith.constant 0 : index
    %25 = vector.load %arg9[%c0_21, %c0_22] : memref<1x128xf32, #tpu.memory_space<vmem>>, vector<1x128xf32>
    %26 = vector.broadcast %25 : vector<1x128xf32> to vector<104x128xf32>
    %27 = arith.addf %24, %26 : vector<104x128xf32>
    %cst_23 = arith.constant 0.000000e+00 : f32
    %28 = vector.broadcast %cst_23 : f32 to vector<104x128xf32>
    %29 = arith.maximumf %27, %28 : vector<104x128xf32>
    %c0_24 = arith.constant 0 : index
    %c0_25 = arith.constant 0 : index
    %30 = vector.load %arg10[%c0_24, %c0_25] : memref<128x128xf32, #tpu.memory_space<vmem>>, vector<128x128xf32>
    %cst_26 = arith.constant dense<0.000000e+00> : vector<104x128xf32>
    %31 = tpu.matmul %29, %30, %cst_26 {dimension_numbers = #tpu.dot_dimension_numbers<[1], [0], [0], [1], [0, 0, 1, 1], [], []>} : vector<104x128xf32>, vector<128x128xf32>, vector<104x128xf32> -> vector<104x128xf32>
    %c0_27 = arith.constant 0 : index
    %c0_28 = arith.constant 0 : index
    %32 = vector.load %arg11[%c0_27, %c0_28] : memref<1x128xf32, #tpu.memory_space<vmem>>, vector<1x128xf32>
    %33 = vector.broadcast %32 : vector<1x128xf32> to vector<104x128xf32>
    %34 = arith.addf %31, %33 : vector<104x128xf32>
    %35 = arith.addf %34, %22 : vector<104x128xf32>
    %cst_29 = arith.constant 0.000000e+00 : f32
    %36 = vector.broadcast %cst_29 : f32 to vector<104x128xf32>
    %37 = arith.maximumf %35, %36 : vector<104x128xf32>
    %c0_30 = arith.constant 0 : index
    %c0_31 = arith.constant 0 : index
    %38 = vector.load %arg12[%c0_30, %c0_31] : memref<128x128xf32, #tpu.memory_space<vmem>>, vector<128x128xf32>
    %cst_32 = arith.constant dense<0.000000e+00> : vector<104x128xf32>
    %39 = tpu.matmul %37, %38, %cst_32 {dimension_numbers = #tpu.dot_dimension_numbers<[1], [0], [0], [1], [0, 0, 1, 1], [], []>} : vector<104x128xf32>, vector<128x128xf32>, vector<104x128xf32> -> vector<104x128xf32>
    %c0_33 = arith.constant 0 : index
    %c0_34 = arith.constant 0 : index
    %40 = vector.load %arg13[%c0_33, %c0_34] : memref<1x128xf32, #tpu.memory_space<vmem>>, vector<1x128xf32>
    %41 = vector.broadcast %40 : vector<1x128xf32> to vector<104x128xf32>
    %42 = arith.addf %39, %41 : vector<104x128xf32>
    %c0_35 = arith.constant 0 : index
    %c0_36 = arith.constant 0 : index
    %43 = vector.load %arg14[%c0_35, %c0_36] : memref<104x128xf32, #tpu.memory_space<vmem>>, vector<104x128xf32>
    tpu.vector_store %arg14[%c0_35, %c0_36], %42 {strides = array<i32>} : memref<104x128xf32, #tpu.memory_space<vmem>>, vector<104x128xf32>,
    return
  }
  func.func @transform_0(%arg0: i32) -> (i32, i32) {
    %c0_i32 = arith.constant 0 : i32
    %c0_i32_0 = arith.constant 0 : i32
    return %arg0, %c0_i32 : i32, i32
  }
  func.func @transform_1(%arg0: i32) -> (i32, i32) {
    %c0_i32 = arith.constant 0 : i32
    %c0_i32_0 = arith.constant 0 : i32
    %c0_i32_1 = arith.constant 0 : i32
    return %c0_i32, %c0_i32_0 : i32, i32
  }
  func.func @transform_2(%arg0: i32) -> (i32, i32) {
    %c0_i32 = arith.constant 0 : i32
    %c0_i32_0 = arith.constant 0 : i32
    %c0_i32_1 = arith.constant 0 : i32
    return %c0_i32, %c0_i32_0 : i32, i32
  }
  func.func @transform_3(%arg0: i32) -> (i32, i32) {
    %c0_i32 = arith.constant 0 : i32
    %c0_i32_0 = arith.constant 0 : i32
    %c0_i32_1 = arith.constant 0 : i32
    return %c0_i32, %c0_i32_0 : i32, i32
  }
  func.func @transform_4(%arg0: i32) -> (i32, i32) {
    %c0_i32 = arith.constant 0 : i32
    %c0_i32_0 = arith.constant 0 : i32
    %c0_i32_1 = arith.constant 0 : i32
    return %c0_i32, %c0_i32_0 : i32, i32
  }
  func.func @transform_5(%arg0: i32) -> (i32, i32) {
    %c0_i32 = arith.constant 0 : i32
    %c0_i32_0 = arith.constant 0 : i32
    %c0_i32_1 = arith.constant 0 : i32
    return %c0_i32, %c0_i32_0 : i32, i32
  }
  func.func @transform_6(%arg0: i32) -> (i32, i32) {
    %c0_i32 = arith.constant 0 : i32
    %c0_i32_0 = arith.constant 0 : i32
    %c0_i32_1 = arith.constant 0 : i32
    return %c0_i32, %c0_i32_0 : i32, i32
  }
  func.func @transform_7(%arg0: i32) -> (i32, i32) {
    %c0_i32 = arith.constant 0 : i32
    %c0_i32_0 = arith.constant 0 : i32
    %c0_i32_1 = arith.constant 0 : i32
    return %c0_i32, %c0_i32_0 : i32, i32
  }
  func.func @transform_8(%arg0: i32) -> (i32, i32) {
    %c0_i32 = arith.constant 0 : i32
    %c0_i32_0 = arith.constant 0 : i32
    %c0_i32_1 = arith.constant 0 : i32
    return %c0_i32, %c0_i32_0 : i32, i32
  }
  func.func @transform_9(%arg0: i32) -> (i32, i32) {
    %c0_i32 = arith.constant 0 : i32
    %c0_i32_0 = arith.constant 0 : i32
    %c0_i32_1 = arith.constant 0 : i32
    return %c0_i32, %c0_i32_0 : i32, i32
  }
  func.func @transform_10(%arg0: i32) -> (i32, i32) {
    %c0_i32 = arith.constant 0 : i32
    %c0_i32_0 = arith.constant 0 : i32
    %c0_i32_1 = arith.constant 0 : i32
    return %c0_i32, %c0_i32_0 : i32, i32
  }
  func.func @transform_11(%arg0: i32) -> (i32, i32) {
    %c0_i32 = arith.constant 0 : i32
    %c0_i32_0 = arith.constant 0 : i32
    %c0_i32_1 = arith.constant 0 : i32
    return %c0_i32, %c0_i32_0 : i32, i32
  }
  func.func @transform_12(%arg0: i32) -> (i32, i32) {
    %c0_i32 = arith.constant 0 : i32
    %c0_i32_0 = arith.constant 0 : i32
    %c0_i32_1 = arith.constant 0 : i32
    return %c0_i32, %c0_i32_0 : i32, i32
  }
  func.func @transform_13(%arg0: i32) -> (i32, i32) {
    %c0_i32 = arith.constant 0 : i32
    %c0_i32_0 = arith.constant 0 : i32
    return %arg0, %c0_i32 : i32, i32
  }
}

module attributes {stable_mosaic.version = 11 : i64} {
  func.func @_mlp_kernel(%arg0: i32, %arg1: memref<104x128xf32, #tpu.memory_space<vmem>>, %arg2: memref<128x128xf32, #tpu.memory_space<vmem>>, %arg3: memref<1x128xf32, #tpu.memory_space<vmem>>, %arg4: memref<128x128xf32, #tpu.memory_space<vmem>>, %arg5: memref<1x128xf32, #tpu.memory_space<vmem>>, %arg6: memref<128x128xf32, #tpu.memory_space<vmem>>, %arg7: memref<1x128xf32, #tpu.memory_space<vmem>>, %arg8: memref<128x128xf32, #tpu.memory_space<vmem>>, %arg9: memref<1x128xf32, #tpu.memory_space<vmem>>, %arg10: memref<128x128xf32, #tpu.memory_space<vmem>>, %arg11: memref<1x128xf32, #tpu.memory_space<vmem>>, %arg12: memref<128x128xf32, #tpu.memory_space<vmem>>, %arg13: memref<1x128xf32, #tpu.memory_space<vmem>>, %arg14: memref<104x128xf32, #tpu.memory_space<vmem>>) attributes {dimension_semantics = [#tpu.dimension_semantics<parallel>], iteration_bounds = array<i64: 2>, scalar_prefetch = 0 : i64, scratch_operands = 0 : i64, tpu.core_type = #tpu.core_type<tc>, window_params = [{transform_indices = @transform_0, window_bounds = array<i64: 104, 128>}, {pipeline_mode = #tpu.pipeline_mode<synchronous>, transform_indices = @transform_1, window_bounds = array<i64: 128, 128>}, {pipeline_mode = #tpu.pipeline_mode<synchronous>, transform_indices = @transform_2, window_bounds = array<i64: 1, 128>}, {pipeline_mode = #tpu.pipeline_mode<synchronous>, transform_indices = @transform_3, window_bounds = array<i64: 128, 128>}, {pipeline_mode = #tpu.pipeline_mode<synchronous>, transform_indices = @transform_4, window_bounds = array<i64: 1, 128>}, {pipeline_mode = #tpu.pipeline_mode<synchronous>, transform_indices = @transform_5, window_bounds = array<i64: 128, 128>}, {pipeline_mode = #tpu.pipeline_mode<synchronous>, transform_indices = @transform_6, window_bounds = array<i64: 1, 128>}, {pipeline_mode = #tpu.pipeline_mode<synchronous>, transform_indices = @transform_7, window_bounds = array<i64: 128, 128>}, {pipeline_mode = #tpu.pipeline_mode<synchronous>, transform_indices = @transform_8, window_bounds = array<i64: 1, 128>}, {pipeline_mode = #tpu.pipeline_mode<synchronous>, transform_indices = @transform_9, window_bounds = array<i64: 128, 128>}, {pipeline_mode = #tpu.pipeline_mode<synchronous>, transform_indices = @transform_10, window_bounds = array<i64: 1, 128>}, {pipeline_mode = #tpu.pipeline_mode<synchronous>, transform_indices = @transform_11, window_bounds = array<i64: 128, 128>}, {pipeline_mode = #tpu.pipeline_mode<synchronous>, transform_indices = @transform_12, window_bounds = array<i64: 1, 128>}, {transform_indices = @transform_13, window_bounds = array<i64: 104, 128>}]} {
    %c0 = arith.constant 0 : index
    %c0_0 = arith.constant 0 : index
    %0 = vector.load %arg1[%c0, %c0_0] : memref<104x128xf32, #tpu.memory_space<vmem>>, vector<104x128xf32>
    %c0_1 = arith.constant 0 : index
    %c0_2 = arith.constant 0 : index
    %1 = vector.load %arg2[%c0_1, %c0_2] : memref<128x128xf32, #tpu.memory_space<vmem>>, vector<128x128xf32>
    %cst = arith.constant dense<0.000000e+00> : vector<104x128xf32>
    %2 = tpu.matmul %0, %1, %cst {dimension_numbers = #tpu.dot_dimension_numbers<[1], [0], [0], [1], [0, 0, 1, 1], [], []>} : vector<104x128xf32>, vector<128x128xf32>, vector<104x128xf32> -> vector<104x128xf32>
    %c0_3 = arith.constant 0 : index
    %c0_4 = arith.constant 0 : index
    %3 = vector.load %arg3[%c0_3, %c0_4] : memref<1x128xf32, #tpu.memory_space<vmem>>, vector<1x128xf32>
    %4 = vector.broadcast %3 : vector<1x128xf32> to vector<104x128xf32>
    %5 = arith.addf %2, %4 : vector<104x128xf32>
    %cst_5 = arith.constant 0.000000e+00 : f32
    %6 = vector.broadcast %cst_5 : f32 to vector<104x128xf32>
    %7 = arith.maximumf %5, %6 : vector<104x128xf32>
    %c0_6 = arith.constant 0 : index
    %c0_7 = arith.constant 0 : index
    %8 = vector.load %arg4[%c0_6, %c0_7] : memref<128x128xf32, #tpu.memory_space<vmem>>, vector<128x128xf32>
    %cst_8 = arith.constant dense<0.000000e+00> : vector<104x128xf32>
    %9 = tpu.matmul %7, %8, %cst_8 {dimension_numbers = #tpu.dot_dimension_numbers<[1], [0], [0], [1], [0, 0, 1, 1], [], []>} : vector<104x128xf32>, vector<128x128xf32>, vector<104x128xf32> -> vector<104x128xf32>
    %c0_9 = arith.constant 0 : index
    %c0_10 = arith.constant 0 : index
    %10 = vector.load %arg5[%c0_9, %c0_10] : memref<1x128xf32, #tpu.memory_space<vmem>>, vector<1x128xf32>
    %11 = vector.broadcast %10 : vector<1x128xf32> to vector<104x128xf32>
    %12 = arith.addf %9, %11 : vector<104x128xf32>
    %cst_11 = arith.constant 0.000000e+00 : f32
    %13 = vector.broadcast %cst_11 : f32 to vector<104x128xf32>
    %14 = arith.maximumf %12, %13 : vector<104x128xf32>
    %c0_12 = arith.constant 0 : index
    %c0_13 = arith.constant 0 : index
    %15 = vector.load %arg6[%c0_12, %c0_13] : memref<128x128xf32, #tpu.memory_space<vmem>>, vector<128x128xf32>
    %cst_14 = arith.constant dense<0.000000e+00> : vector<104x128xf32>
    %16 = tpu.matmul %14, %15, %cst_14 {dimension_numbers = #tpu.dot_dimension_numbers<[1], [0], [0], [1], [0, 0, 1, 1], [], []>} : vector<104x128xf32>, vector<128x128xf32>, vector<104x128xf32> -> vector<104x128xf32>
    %c0_15 = arith.constant 0 : index
    %c0_16 = arith.constant 0 : index
    %17 = vector.load %arg7[%c0_15, %c0_16] : memref<1x128xf32, #tpu.memory_space<vmem>>, vector<1x128xf32>
    %18 = vector.broadcast %17 : vector<1x128xf32> to vector<104x128xf32>
    %19 = arith.addf %16, %18 : vector<104x128xf32>
    %20 = arith.addf %19, %7 : vector<104x128xf32>
    %cst_17 = arith.constant 0.000000e+00 : f32
    %21 = vector.broadcast %cst_17 : f32 to vector<104x128xf32>
    %22 = arith.maximumf %20, %21 : vector<104x128xf32>
    %c0_18 = arith.constant 0 : index
    %c0_19 = arith.constant 0 : index
    %23 = vector.load %arg8[%c0_18, %c0_19] : memref<128x128xf32, #tpu.memory_space<vmem>>, vector<128x128xf32>
    %cst_20 = arith.constant dense<0.000000e+00> : vector<104x128xf32>
    %24 = tpu.matmul %22, %23, %cst_20 {dimension_numbers = #tpu.dot_dimension_numbers<[1], [0], [0], [1], [0, 0, 1, 1], [], []>} : vector<104x128xf32>, vector<128x128xf32>, vector<104x128xf32> -> vector<104x128xf32>
    %c0_21 = arith.constant 0 : index
    %c0_22 = arith.constant 0 : index
    %25 = vector.load %arg9[%c0_21, %c0_22] : memref<1x128xf32, #tpu.memory_space<vmem>>, vector<1x128xf32>
    %26 = vector.broadcast %25 : vector<1x128xf32> to vector<104x128xf32>
    %27 = arith.addf %24, %26 : vector<104x128xf32>
    %cst_23 = arith.constant 0.000000e+00 : f32
    %28 = vector.broadcast %cst_23 : f32 to vector<104x128xf32>
    %29 = arith.maximumf %27, %28 : vector<104x128xf32>
    %c0_24 = arith.constant 0 : index
    %c0_25 = arith.constant 0 : index
    %30 = vector.load %arg10[%c0_24, %c0_25] : memref<128x128xf32, #tpu.memory_space<vmem>>, vector<128x128xf32>
    %cst_26 = arith.constant dense<0.000000e+00> : vector<104x128xf32>
    %31 = tpu.matmul %29, %30, %cst_26 {dimension_numbers = #tpu.dot_dimension_numbers<[1], [0], [0], [1], [0, 0, 1, 1], [], []>} : vector<104x128xf32>, vector<128x128xf32>, vector<104x128xf32> -> vector<104x128xf32>
    %c0_27 = arith.constant 0 : index
    %c0_28 = arith.constant 0 : index
    %32 = vector.load %arg11[%c0_27, %c0_28] : memref<1x128xf32, #tpu.memory_space<vmem>>, vector<1x128xf32>
    %33 = vector.broadcast %32 : vector<1x128xf32> to vector<104x128xf32>
    %34 = arith.addf %31, %33 : vector<104x128xf32>
    %35 = arith.addf %34, %22 : vector<104x128xf32>
    %cst_29 = arith.constant 0.000000e+00 : f32
    %36 = vector.broadcast %cst_29 : f32 to vector<104x128xf32>
    %37 = arith.maximumf %35, %36 : vector<104x128xf32>
    %c0_30 = arith.constant 0 : index
    %c0_31 = arith.constant 0 : index
    %38 = vector.load %arg12[%c0_30, %c0_31] : memref<128x128xf32, #tpu.memory_space<vmem>>, vector<128x128xf32>
    %cst_32 = arith.constant dense<0.000000e+00> : vector<104x128xf32>
    %39 = tpu.matmul %37, %38, %cst_32 {dimension_numbers = #tpu.dot_dimension_numbers<[1], [0], [0], [1], [0, 0, 1, 1], [], []>} : vector<104x128xf32>, vector<128x128xf32>, vector<104x128xf32> -> vector<104x128xf32>
    %c0_33 = arith.constant 0 : index
    %c0_34 = arith.constant 0 : index
    %40 = vector.load %arg13[%c0_33, %c0_34] : memref<1x128xf32, #tpu.memory_space<vmem>>, vector<1x128xf32>
    %41 = vector.broadcast %40 : vector<1x128xf32> to vector<104x128xf32>
    %42 = arith.addf %39, %41 : vector<104x128xf32>
    %c0_35 = arith.constant 0 : index
    %c0_36 = arith.constant 0 : index
    %43 = vector.load %arg14[%c0_35, %c0_36] : memref<104x128xf32, #tpu.memory_space<vmem>>, vector<104x128xf32>
    tpu.vector_store %arg14[%c0_35, %c0_36], %42 {strides = array<i32>} : memref<104x128xf32, #tpu.memory_space<vmem>>, vector<104x128xf32>,
    return
  }
  func.func @transform_0(%arg0: i32) -> (i32, i32) {
    %c0_i32 = arith.constant 0 : i32
    %c0_i32_0 = arith.constant 0 : i32
    return %arg0, %c0_i32 : i32, i32
  }
  func.func @transform_1(%arg0: i32) -> (i32, i32) {
    %c0_i32 = arith.constant 0 : i32
    %c0_i32_0 = arith.constant 0 : i32
    %c0_i32_1 = arith.constant 0 : i32
    return %c0_i32, %c0_i32_0 : i32, i32
  }
  func.func @transform_2(%arg0: i32) -> (i32, i32) {
    %c0_i32 = arith.constant 0 : i32
    %c0_i32_0 = arith.constant 0 : i32
    %c0_i32_1 = arith.constant 0 : i32
    return %c0_i32, %c0_i32_0 : i32, i32
  }
  func.func @transform_3(%arg0: i32) -> (i32, i32) {
    %c0_i32 = arith.constant 0 : i32
    %c0_i32_0 = arith.constant 0 : i32
    %c0_i32_1 = arith.constant 0 : i32
    return %c0_i32, %c0_i32_0 : i32, i32
  }
  func.func @transform_4(%arg0: i32) -> (i32, i32) {
    %c0_i32 = arith.constant 0 : i32
    %c0_i32_0 = arith.constant 0 : i32
    %c0_i32_1 = arith.constant 0 : i32
    return %c0_i32, %c0_i32_0 : i32, i32
  }
  func.func @transform_5(%arg0: i32) -> (i32, i32) {
    %c0_i32 = arith.constant 0 : i32
    %c0_i32_0 = arith.constant 0 : i32
    %c0_i32_1 = arith.constant 0 : i32
    return %c0_i32, %c0_i32_0 : i32, i32
  }
  func.func @transform_6(%arg0: i32) -> (i32, i32) {
    %c0_i32 = arith.constant 0 : i32
    %c0_i32_0 = arith.constant 0 : i32
    %c0_i32_1 = arith.constant 0 : i32
    return %c0_i32, %c0_i32_0 : i32, i32
  }
  func.func @transform_7(%arg0: i32) -> (i32, i32) {
    %c0_i32 = arith.constant 0 : i32
    %c0_i32_0 = arith.constant 0 : i32
    %c0_i32_1 = arith.constant 0 : i32
    return %c0_i32, %c0_i32_0 : i32, i32
  }
  func.func @transform_8(%arg0: i32) -> (i32, i32) {
    %c0_i32 = arith.constant 0 : i32
    %c0_i32_0 = arith.constant 0 : i32
    %c0_i32_1 = arith.constant 0 : i32
    return %c0_i32, %c0_i32_0 : i32, i32
  }
  func.func @transform_9(%arg0: i32) -> (i32, i32) {
    %c0_i32 = arith.constant 0 : i32
    %c0_i32_0 = arith.constant 0 : i32
    %c0_i32_1 = arith.constant 0 : i32
    return %c0_i32, %c0_i32_0 : i32, i32
  }
  func.func @transform_10(%arg0: i32) -> (i32, i32) {
    %c0_i32 = arith.constant 0 : i32
    %c0_i32_0 = arith.constant 0 : i32
    %c0_i32_1 = arith.constant 0 : i32
    return %c0_i32, %c0_i32_0 : i32, i32
  }
  func.func @transform_11(%arg0: i32) -> (i32, i32) {
    %c0_i32 = arith.constant 0 : i32
    %c0_i32_0 = arith.constant 0 : i32
    %c0_i32_1 = arith.constant 0 : i32
    return %c0_i32, %c0_i32_0 : i32, i32
  }
  func.func @transform_12(%arg0: i32) -> (i32, i32) {
    %c0_i32 = arith.constant 0 : i32
    %c0_i32_0 = arith.constant 0 : i32
    %c0_i32_1 = arith.constant 0 : i32
    return %c0_i32, %c0_i32_0 : i32, i32
  }
  func.func @transform_13(%arg0: i32) -> (i32, i32) {
    %c0_i32 = arith.constant 0 : i32
    %c0_i32_0 = arith.constant 0 : i32
    return %arg0, %c0_i32 : i32, i32
  }
}

</mosaic_0001>

<llo_original>
// kernel: tpu_custom_call.1
$region0: #{tpu_custom_call.1}
  #allocation0 [shape = 'u32[]', space=smem, size = 0x4, offset = 0x4, fixed_abs, tag = 'smem constant byte address 0x4 - core index']
  #allocation1 [shape = 'u32[72,128]{1,0:T(1,128)}', space=vmem, size = 0x9000, scoped, tag = 'internal scratch']
  %s0 = inlined_call_operand.hbm [shape: f32[208,128], index: 0, kind: input, shape index: {}]
  %s1 = inlined_call_operand.hbm [shape: f32[128,128], index: 1, kind: input, shape index: {}]
  %s2 = inlined_call_operand.vmem [shape: f32[1,128], index: 2, kind: input, shape index: {}]
  %s3 = inlined_call_operand.hbm [shape: f32[128,128], index: 3, kind: input, shape index: {}]
  %s4 = inlined_call_operand.vmem [shape: f32[1,128], index: 4, kind: input, shape index: {}]
  %s5 = inlined_call_operand.hbm [shape: f32[128,128], index: 5, kind: input, shape index: {}]
  %s6 = inlined_call_operand.vmem [shape: f32[1,128], index: 6, kind: input, shape index: {}]
  %s7 = inlined_call_operand.hbm [shape: f32[128,128], index: 7, kind: input, shape index: {}]
  %s8 = inlined_call_operand.vmem [shape: f32[1,128], index: 8, kind: input, shape index: {}]
  %s9 = inlined_call_operand.hbm [shape: f32[128,128], index: 9, kind: input, shape index: {}]
  %s10 = inlined_call_operand.vmem [shape: f32[1,128], index: 10, kind: input, shape index: {}]
  %s11 = inlined_call_operand.hbm [shape: f32[128,128], index: 11, kind: input, shape index: {}]
  %s12 = inlined_call_operand.vmem [shape: f32[1,128], index: 12, kind: input, shape index: {}]
  %s13 = inlined_call_operand.hbm [shape: f32[208,128], index: 13, kind: output, shape index: {}]
  %s14 = sld [smem:[#allocation0]]
  $region113: #{tpu_custom_call.1} parent=0
    _
  %s16 = ssub.s32 1, %s14
  %s17 = scalar_select 0, %s16, %s14
  $region1: #{tpu_custom_call.1} parent=0
    #allocation2 [shape = 'u8[106496]{0}', space=vmem, size = 0x1a000, scoped, tag = 'input window, operand 0']
    #allocation3 [shape = 's32[2]{0}', space=sflag, size = 0x8, scoped, tag = 'scoped memory for tpu_custom_call.1']
    #allocation4 [shape = 's32[2]{0}', space=sflag, size = 0x8, scoped, tag = 'scoped memory for tpu_custom_call.1']
    #allocation5 [shape = 'u8[65536]{0}', space=vmem, size = 0x10000, scoped, tag = 'input window, operand 1, single buffered']
    #allocation6 [shape = 's32[1]{0}', space=sflag, size = 0x4, scoped, tag = 'scoped memory for tpu_custom_call.1']
    #allocation7 [shape = 'u8[65536]{0}', space=vmem, size = 0x10000, scoped, tag = 'input window, operand 3, single buffered']
    #allocation8 [shape = 'u8[65536]{0}', space=vmem, size = 0x10000, scoped, tag = 'input window, operand 5, single buffered']
    #allocation9 [shape = 's32[1]{0}', space=sflag, size = 0x4, scoped, tag = 'scoped memory for tpu_custom_call.1']
    #allocation10 [shape = 'u8[65536]{0}', space=vmem, size = 0x10000, scoped, tag = 'input window, operand 7, single buffered']
    #allocation11 [shape = 'u8[65536]{0}', space=vmem, size = 0x10000, scoped, tag = 'input window, operand 9, single buffered']
    #allocation12 [shape = 's32[1]{0}', space=sflag, size = 0x4, scoped, tag = 'scoped memory for tpu_custom_call.1']
    #allocation13 [shape = 'u8[65536]{0}', space=vmem, size = 0x10000, scoped, tag = 'input window, operand 11, single buffered']
    #allocation14 [shape = 'u8[106496]{0}', space=vmem, size = 0x1a000, scoped, tag = 'output window, operand 0']
    %18 = vsyncpa [#allocation3], 0
    %s19 = scalar_lea.sflag [#allocation3], 1
    %20 = vsyncpa %s19, 0
    %21 = vsyncpa [#allocation6], 0
    %22 = vsyncpa [#allocation9], 0
    %23 = vsyncpa [#allocation12], 0
    %24 = vsyncpa [#allocation4], 0
    %s25 = scalar_lea.sflag [#allocation4], 1
    %26 = vsyncpa %s25, 0
    loop: start=0, step=1, limit=4
    $region2: #{tpu_custom_call.1} parent=1 // loop_pre_header
      _
    $region3: #{tpu_custom_call.1} parent=1 // loop_header
      %s28 = sphi 0, %s32
      %p29 = scmp.ge.s32.totalorder %s28, 4
      %s38 = sphi 0, %s40
      %s41 = sphi 0, %s38
      %s42 = sphi 0, %s41
      %s58 = sphi 0, %s42
      %s62 = sphi 0, %s62
      %s64 = sphi 0, %s62
      %s65 = sphi 0, %s64
      %s79 = sphi 0, %s65
      %s83 = sphi 0, %s83
      %s85 = sphi 0, %s83
      %s86 = sphi 0, %s85
      %s100 = sphi 0, %s86
      %s104 = sphi 0, %s104
      %s106 = sphi 0, %s104
      %s107 = sphi 0, %s106
      %s121 = sphi 0, %s107
      %s125 = sphi 0, %s125
      %s127 = sphi 0, %s125
      %s128 = sphi 0, %s127
      %s142 = sphi 0, %s128
      %s146 = sphi 0, %s146
      %s148 = sphi 0, %s146
      %s149 = sphi 0, %s148
      %s163 = sphi 0, %s149
      %s167 = sphi 0, %s167
      %s169 = sphi 0, %s167
      %s170 = sphi 0, %s169
      %s184 = sphi 0, %s170
      %s188 = sphi 0, %s188
      %s190 = sphi 0, %s188
      %s191 = sphi 0, %s190
      %s205 = sphi 0, %s191
      %s209 = sphi 0, %s209
      %s211 = sphi 0, %s209
      %s212 = sphi 0, %s211
      %s226 = sphi 0, %s212
      %s230 = sphi 0, %s230
      %s232 = sphi 0, %s230
      %s233 = sphi 0, %s232
      %s247 = sphi 0, %s233
      %s251 = sphi 0, %s251
      %s253 = sphi 0, %s251
      %s254 = sphi 0, %s253
      %s268 = sphi 0, %s254
      %s272 = sphi 0, %s272
      %s274 = sphi 0, %s272
      %s275 = sphi 0, %s274
      %s289 = sphi 0, %s275
      %s293 = sphi 0, %s293
      %s295 = sphi 0, %s293
      %s296 = sphi 0, %s295
      %s310 = sphi 0, %s296
      %s316 = sphi 0, %s318
      %s319 = sphi 0, %s316
      %s320 = sphi 0, %s319
      %s336 = sphi 0, %s320
    $region4: #{tpu_custom_call.1} parent=1 // loop_header_branch
      %31 = sbr.rel (%p29) target = $region8
    $region5: #{tpu_custom_call.1} parent=1 // loop_body
      %s33 = ssub.s32 %s28, 1
      %s34 = ssub.s32 %s28, 2
      %s35 = sadd.s32 %s28, 1
      %s36 = ssub.s32 %s28, %s35
      %p37 = scmp.eq.s32.totalorder %s36, 0
      %s39 = sadd.s32 %s38, 1
      %s40 = scalar_select %p37, %s38, %s39
      %p43 = pneg %p37
      %p44 = scmp.eq.s32.totalorder %s28, 1
      %p45 = por %p43, %p44
      %p46 = scmp.ne.s32.totalorder %s38, %s41
      %p47 = scmp.eq.s32.totalorder %s28, 0
      %p48 = por %p46, %p47
      %p49 = scmp.ne.s32.totalorder %s38, %s41
      %p50 = scmp.eq.s32.totalorder %s33, 1
      %p51 = por %p49, %p50
      %p52 = scmp.ne.s32.totalorder %s41, %s42
      %p53 = scmp.eq.s32.totalorder %s33, 0
      %p54 = por %p52, %p53
      %p55 = scmp.ne.s32.totalorder %s41, %s42
      %p56 = scmp.eq.s32.totalorder %s34, 1
      %p57 = por %p55, %p56
      %p59 = scmp.ne.s32.totalorder %s42, %s58
      %p60 = scmp.eq.s32.totalorder %s34, 0
      %p61 = por %p59, %p60
      %s63 = sadd.s32 %s62, 1
      %p66 = scmp.eq.s32.totalorder %s28, 1
      %p67 = scmp.ne.s32.totalorder %s62, %s64
      %p68 = scmp.eq.s32.totalorder %s28, 0
      %p69 = por %p67, %p68
      %p70 = scmp.ne.s32.totalorder %s62, %s64
      %p71 = scmp.eq.s32.totalorder %s33, 1
      %p72 = por %p70, %p71
      %p73 = scmp.ne.s32.totalorder %s64, %s65
      %p74 = scmp.eq.s32.totalorder %s33, 0
      %p75 = por %p73, %p74
      %p76 = scmp.ne.s32.totalorder %s64, %s65
      %p77 = scmp.eq.s32.totalorder %s34, 1
      %p78 = por %p76, %p77
      %p80 = scmp.ne.s32.totalorder %s65, %s79
      %p81 = scmp.eq.s32.totalorder %s34, 0
      %p82 = por %p80, %p81
      %s84 = sadd.s32 %s83, 1
      %p87 = scmp.eq.s32.totalorder %s28, 1
      %p88 = scmp.ne.s32.totalorder %s83, %s85
      %p89 = scmp.eq.s32.totalorder %s28, 0
      %p90 = por %p88, %p89
      %p91 = scmp.ne.s32.totalorder %s83, %s85
      %p92 = scmp.eq.s32.totalorder %s33, 1
      %p93 = por %p91, %p92
      %p94 = scmp.ne.s32.totalorder %s85, %s86
      %p95 = scmp.eq.s32.totalorder %s33, 0
      %p96 = por %p94, %p95
      %p97 = scmp.ne.s32.totalorder %s85, %s86
      %p98 = scmp.eq.s32.totalorder %s34, 1
      %p99 = por %p97, %p98
      %p101 = scmp.ne.s32.totalorder %s86, %s100
      %p102 = scmp.eq.s32.totalorder %s34, 0
      %p103 = por %p101, %p102
      %s105 = sadd.s32 %s104, 1
      %p108 = scmp.eq.s32.totalorder %s28, 1
      %p109 = scmp.ne.s32.totalorder %s104, %s106
      %p110 = scmp.eq.s32.totalorder %s28, 0
      %p111 = por %p109, %p110
      %p112 = scmp.ne.s32.totalorder %s104, %s106
      %p113 = scmp.eq.s32.totalorder %s33, 1
      %p114 = por %p112, %p113
      %p115 = scmp.ne.s32.totalorder %s106, %s107
      %p116 = scmp.eq.s32.totalorder %s33, 0
      %p117 = por %p115, %p116
      %p118 = scmp.ne.s32.totalorder %s106, %s107
      %p119 = scmp.eq.s32.totalorder %s34, 1
      %p120 = por %p118, %p119
      %p122 = scmp.ne.s32.totalorder %s107, %s121
      %p123 = scmp.eq.s32.totalorder %s34, 0
      %p124 = por %p122, %p123
      %s126 = sadd.s32 %s125, 1
      %p129 = scmp.eq.s32.totalorder %s28, 1
      %p130 = scmp.ne.s32.totalorder %s125, %s127
      %p131 = scmp.eq.s32.totalorder %s28, 0
      %p132 = por %p130, %p131
      %p133 = scmp.ne.s32.totalorder %s125, %s127
      %p134 = scmp.eq.s32.totalorder %s33, 1
      %p135 = por %p133, %p134
      %p136 = scmp.ne.s32.totalorder %s127, %s128
      %p137 = scmp.eq.s32.totalorder %s33, 0
      %p138 = por %p136, %p137
      %p139 = scmp.ne.s32.totalorder %s127, %s128
      %p140 = scmp.eq.s32.totalorder %s34, 1
      %p141 = por %p139, %p140
      %p143 = scmp.ne.s32.totalorder %s128, %s142
      %p144 = scmp.eq.s32.totalorder %s34, 0
      %p145 = por %p143, %p144
      %s147 = sadd.s32 %s146, 1
      %p150 = scmp.eq.s32.totalorder %s28, 1
      %p151 = scmp.ne.s32.totalorder %s146, %s148
      %p152 = scmp.eq.s32.totalorder %s28, 0
      %p153 = por %p151, %p152
      %p154 = scmp.ne.s32.totalorder %s146, %s148
      %p155 = scmp.eq.s32.totalorder %s33, 1
      %p156 = por %p154, %p155
      %p157 = scmp.ne.s32.totalorder %s148, %s149
      %p158 = scmp.eq.s32.totalorder %s33, 0
      %p159 = por %p157, %p158
      %p160 = scmp.ne.s32.totalorder %s148, %s149
      %p161 = scmp.eq.s32.totalorder %s34, 1
      %p162 = por %p160, %p161
      %p164 = scmp.ne.s32.totalorder %s149, %s163
      %p165 = scmp.eq.s32.totalorder %s34, 0
      %p166 = por %p164, %p165
      %s168 = sadd.s32 %s167, 1
      %p171 = scmp.eq.s32.totalorder %s28, 1
      %p172 = scmp.ne.s32.totalorder %s167, %s169
      %p173 = scmp.eq.s32.totalorder %s28, 0
      %p174 = por %p172, %p173
      %p175 = scmp.ne.s32.totalorder %s167, %s169
      %p176 = scmp.eq.s32.totalorder %s33, 1
      %p177 = por %p175, %p176
      %p178 = scmp.ne.s32.totalorder %s169, %s170
      %p179 = scmp.eq.s32.totalorder %s33, 0
      %p180 = por %p178, %p179
      %p181 = scmp.ne.s32.totalorder %s169, %s170
      %p182 = scmp.eq.s32.totalorder %s34, 1
      %p183 = por %p181, %p182
      %p185 = scmp.ne.s32.totalorder %s170, %s184
      %p186 = scmp.eq.s32.totalorder %s34, 0
      %p187 = por %p185, %p186
      %s189 = sadd.s32 %s188, 1
      %p192 = scmp.eq.s32.totalorder %s28, 1
      %p193 = scmp.ne.s32.totalorder %s188, %s190
      %p194 = scmp.eq.s32.totalorder %s28, 0
      %p195 = por %p193, %p194
      %p196 = scmp.ne.s32.totalorder %s188, %s190
      %p197 = scmp.eq.s32.totalorder %s33, 1
      %p198 = por %p196, %p197
      %p199 = scmp.ne.s32.totalorder %s190, %s191
      %p200 = scmp.eq.s32.totalorder %s33, 0
      %p201 = por %p199, %p200
      %p202 = scmp.ne.s32.totalorder %s190, %s191
      %p203 = scmp.eq.s32.totalorder %s34, 1
      %p204 = por %p202, %p203
      %p206 = scmp.ne.s32.totalorder %s191, %s205
      %p207 = scmp.eq.s32.totalorder %s34, 0
      %p208 = por %p206, %p207
      %s210 = sadd.s32 %s209, 1
      %p213 = scmp.eq.s32.totalorder %s28, 1
      %p214 = scmp.ne.s32.totalorder %s209, %s211
      %p215 = scmp.eq.s32.totalorder %s28, 0
      %p216 = por %p214, %p215
      %p217 = scmp.ne.s32.totalorder %s209, %s211
      %p218 = scmp.eq.s32.totalorder %s33, 1
      %p219 = por %p217, %p218
      %p220 = scmp.ne.s32.totalorder %s211, %s212
      %p221 = scmp.eq.s32.totalorder %s33, 0
      %p222 = por %p220, %p221
      %p223 = scmp.ne.s32.totalorder %s211, %s212
      %p224 = scmp.eq.s32.totalorder %s34, 1
      %p225 = por %p223, %p224
      %p227 = scmp.ne.s32.totalorder %s212, %s226
      %p228 = scmp.eq.s32.totalorder %s34, 0
      %p229 = por %p227, %p228
      %s231 = sadd.s32 %s230, 1
      %p234 = scmp.eq.s32.totalorder %s28, 1
      %p235 = scmp.ne.s32.totalorder %s230, %s232
      %p236 = scmp.eq.s32.totalorder %s28, 0
      %p237 = por %p235, %p236
      %p238 = scmp.ne.s32.totalorder %s230, %s232
      %p239 = scmp.eq.s32.totalorder %s33, 1
      %p240 = por %p238, %p239
      %p241 = scmp.ne.s32.totalorder %s232, %s233
      %p242 = scmp.eq.s32.totalorder %s33, 0
      %p243 = por %p241, %p242
      %p244 = scmp.ne.s32.totalorder %s232, %s233
      %p245 = scmp.eq.s32.totalorder %s34, 1
      %p246 = por %p244, %p245
      %p248 = scmp.ne.s32.totalorder %s233, %s247
      %p249 = scmp.eq.s32.totalorder %s34, 0
      %p250 = por %p248, %p249
      %s252 = sadd.s32 %s251, 1
      %p255 = scmp.eq.s32.totalorder %s28, 1
      %p256 = scmp.ne.s32.totalorder %s251, %s253
      %p257 = scmp.eq.s32.totalorder %s28, 0
      %p258 = por %p256, %p257
      %p259 = scmp.ne.s32.totalorder %s251, %s253
      %p260 = scmp.eq.s32.totalorder %s33, 1
      %p261 = por %p259, %p260
      %p262 = scmp.ne.s32.totalorder %s253, %s254
      %p263 = scmp.eq.s32.totalorder %s33, 0
      %p264 = por %p262, %p263
      %p265 = scmp.ne.s32.totalorder %s253, %s254
      %p266 = scmp.eq.s32.totalorder %s34, 1
      %p267 = por %p265, %p266
      %p269 = scmp.ne.s32.totalorder %s254, %s268
      %p270 = scmp.eq.s32.totalorder %s34, 0
      %p271 = por %p269, %p270
      %s273 = sadd.s32 %s272, 1
      %p276 = scmp.eq.s32.totalorder %s28, 1
      %p277 = scmp.ne.s32.totalorder %s272, %s274
      %p278 = scmp.eq.s32.totalorder %s28, 0
      %p279 = por %p277, %p278
      %p280 = scmp.ne.s32.totalorder %s272, %s274
      %p281 = scmp.eq.s32.totalorder %s33, 1
      %p282 = por %p280, %p281
      %p283 = scmp.ne.s32.totalorder %s274, %s275
      %p284 = scmp.eq.s32.totalorder %s33, 0
      %p285 = por %p283, %p284
      %p286 = scmp.ne.s32.totalorder %s274, %s275
      %p287 = scmp.eq.s32.totalorder %s34, 1
      %p288 = por %p286, %p287
      %p290 = scmp.ne.s32.totalorder %s275, %s289
      %p291 = scmp.eq.s32.totalorder %s34, 0
      %p292 = por %p290, %p291
      %s294 = sadd.s32 %s293, 1
      %p297 = scmp.eq.s32.totalorder %s28, 1
      %p298 = scmp.ne.s32.totalorder %s293, %s295
      %p299 = scmp.eq.s32.totalorder %s28, 0
      %p300 = por %p298, %p299
      %p301 = scmp.ne.s32.totalorder %s293, %s295
      %p302 = scmp.eq.s32.totalorder %s33, 1
      %p303 = por %p301, %p302
      %p304 = scmp.ne.s32.totalorder %s295, %s296
      %p305 = scmp.eq.s32.totalorder %s33, 0
      %p306 = por %p304, %p305
      %p307 = scmp.ne.s32.totalorder %s295, %s296
      %p308 = scmp.eq.s32.totalorder %s34, 1
      %p309 = por %p307, %p308
      %p311 = scmp.ne.s32.totalorder %s296, %s310
      %p312 = scmp.eq.s32.totalorder %s34, 0
      %p313 = por %p311, %p312
      %s314 = ssub.s32 %s28, %s35
      %p315 = scmp.eq.s32.totalorder %s314, 0
      %s317 = sadd.s32 %s316, 1
      %s318 = scalar_select %p315, %s316, %s317
      %p321 = pneg %p315
      %p322 = scmp.eq.s32.totalorder %s28, 1
      %p323 = por %p321, %p322
      %p324 = scmp.ne.s32.totalorder %s316, %s319
      %p325 = scmp.eq.s32.totalorder %s28, 0
      %p326 = por %p324, %p325
      %p327 = scmp.ne.s32.totalorder %s316, %s319
      %p328 = scmp.eq.s32.totalorder %s33, 1
      %p329 = por %p327, %p328
      %p330 = scmp.ne.s32.totalorder %s319, %s320
      %p331 = scmp.eq.s32.totalorder %s33, 0
      %p332 = por %p330, %p331
      %p333 = scmp.ne.s32.totalorder %s319, %s320
      %p334 = scmp.eq.s32.totalorder %s34, 1
      %p335 = por %p333, %p334
      %p337 = scmp.ne.s32.totalorder %s320, %s336
      %p338 = scmp.eq.s32.totalorder %s34, 0
      %p339 = por %p337, %p338
      %p340 = scmp.le.s32.totalorder 1, %s28
      %p341 = scmp.lt.s32.totalorder %s28, 3
      %p342 = pnand %p340, %p341
      %p343 = pneg %p342
      // Predicated region
      $region9: #{tpu_custom_call.1} parent=5 // pred_check
        _
      $region10: #{tpu_custom_call.1} parent=5 // pred_check_branch
        %345 = sbr.rel (%p342) target = $region12
      $region11: #{tpu_custom_call.1} parent=5 // pred_region
        %s346 = ssub.s32 %s28, 1
        // Predicated region
        $region13: #{tpu_custom_call.1} parent=11 // pred_check
          %p347 = pneg %p75
        $region14: #{tpu_custom_call.1} parent=11 // pred_check_branch
          %349 = sbr.rel (%p347) target = $region16
        $region15: #{tpu_custom_call.1} parent=11 // pred_region
          %351 = vsyncadd [#allocation6], 0
          %s352 = sshll.u32 %s1, 4
          %s353 = int_to_ptr.hbm [resolvable:$true] %s352
          %s354 = sshll.u32 [#allocation5], 4
          %s355 = int_to_ptr.vmem [resolvable:$true] %s354
          %360 = dma.hbm_to_vmem [thread:$0]  %s353, 2048, %s355, [#allocation6], 128, 128, 8
        $region16: #{tpu_custom_call.1} parent=11 // pred_fallthru
          _
        // Predicated region
        $region17: #{tpu_custom_call.1} parent=11 // pred_check
          %p361 = pneg %p96
        $region18: #{tpu_custom_call.1} parent=11 // pred_check_branch
          %363 = sbr.rel (%p361) target = $region20
        $region19: #{tpu_custom_call.1} parent=11 // pred_region
          _
        $region20: #{tpu_custom_call.1} parent=11 // pred_fallthru
          _
        // Predicated region
        $region21: #{tpu_custom_call.1} parent=11 // pred_check
          %p364 = pneg %p117
        $region22: #{tpu_custom_call.1} parent=11 // pred_check_branch
          %366 = sbr.rel (%p364) target = $region24
        $region23: #{tpu_custom_call.1} parent=11 // pred_region
          %368 = vsyncadd [#allocation6], 0
          %s369 = sshll.u32 %s3, 4
          %s370 = int_to_ptr.hbm [resolvable:$true] %s369
          %s371 = sshll.u32 [#allocation7], 4
          %s372 = int_to_ptr.vmem [resolvable:$true] %s371
          %377 = dma.hbm_to_vmem [thread:$0]  %s370, 2048, %s372, [#allocation6], 128, 128, 8
        $region24: #{tpu_custom_call.1} parent=11 // pred_fallthru
          _
        // Predicated region
        $region25: #{tpu_custom_call.1} parent=11 // pred_check
          %p378 = pneg %p138
        $region26: #{tpu_custom_call.1} parent=11 // pred_check_branch
          %380 = sbr.rel (%p378) target = $region28
        $region27: #{tpu_custom_call.1} parent=11 // pred_region
          _
        $region28: #{tpu_custom_call.1} parent=11 // pred_fallthru
          _
        // Predicated region
        $region29: #{tpu_custom_call.1} parent=11 // pred_check
          %p381 = pneg %p159
        $region30: #{tpu_custom_call.1} parent=11 // pred_check_branch
          %383 = sbr.rel (%p381) target = $region32
        $region31: #{tpu_custom_call.1} parent=11 // pred_region
          %385 = vsyncadd [#allocation9], 0
          %s386 = sshll.u32 %s5, 4
          %s387 = int_to_ptr.hbm [resolvable:$true] %s386
          %s388 = sshll.u32 [#allocation8], 4
          %s389 = int_to_ptr.vmem [resolvable:$true] %s388
          %394 = dma.hbm_to_vmem [thread:$0]  %s387, 2048, %s389, [#allocation9], 128, 128, 8
        $region32: #{tpu_custom_call.1} parent=11 // pred_fallthru
          _
        // Predicated region
        $region33: #{tpu_custom_call.1} parent=11 // pred_check
          %p395 = pneg %p180
        $region34: #{tpu_custom_call.1} parent=11 // pred_check_branch
          %397 = sbr.rel (%p395) target = $region36
        $region35: #{tpu_custom_call.1} parent=11 // pred_region
          _
        $region36: #{tpu_custom_call.1} parent=11 // pred_fallthru
          _
        // Predicated region
        $region37: #{tpu_custom_call.1} parent=11 // pred_check
          %p398 = pneg %p201
        $region38: #{tpu_custom_call.1} parent=11 // pred_check_branch
          %400 = sbr.rel (%p398) target = $region40
        $region39: #{tpu_custom_call.1} parent=11 // pred_region
          %402 = vsyncadd [#allocation9], 0
          %s403 = sshll.u32 %s7, 4
          %s404 = int_to_ptr.hbm [resolvable:$true] %s403
          %s405 = sshll.u32 [#allocation10], 4
          %s406 = int_to_ptr.vmem [resolvable:$true] %s405
          %411 = dma.hbm_to_vmem [thread:$0]  %s404, 2048, %s406, [#allocation9], 128, 128, 8
        $region40: #{tpu_custom_call.1} parent=11 // pred_fallthru
          _
        // Predicated region
        $region41: #{tpu_custom_call.1} parent=11 // pred_check
          %p412 = pneg %p222
        $region42: #{tpu_custom_call.1} parent=11 // pred_check_branch
          %414 = sbr.rel (%p412) target = $region44
        $region43: #{tpu_custom_call.1} parent=11 // pred_region
          _
        $region44: #{tpu_custom_call.1} parent=11 // pred_fallthru
          _
        // Predicated region
        $region45: #{tpu_custom_call.1} parent=11 // pred_check
          %p415 = pneg %p243
        $region46: #{tpu_custom_call.1} parent=11 // pred_check_branch
          %417 = sbr.rel (%p415) target = $region48
        $region47: #{tpu_custom_call.1} parent=11 // pred_region
          %419 = vsyncadd [#allocation12], 0
          %s420 = sshll.u32 %s9, 4
          %s421 = int_to_ptr.hbm [resolvable:$true] %s420
          %s422 = sshll.u32 [#allocation11], 4
          %s423 = int_to_ptr.vmem [resolvable:$true] %s422
          %428 = dma.hbm_to_vmem [thread:$0]  %s421, 2048, %s423, [#allocation12], 128, 128, 8
        $region48: #{tpu_custom_call.1} parent=11 // pred_fallthru
          _
        // Predicated region
        $region49: #{tpu_custom_call.1} parent=11 // pred_check
          %p429 = pneg %p264
        $region50: #{tpu_custom_call.1} parent=11 // pred_check_branch
          %431 = sbr.rel (%p429) target = $region52
        $region51: #{tpu_custom_call.1} parent=11 // pred_region
          _
        $region52: #{tpu_custom_call.1} parent=11 // pred_fallthru
          _
        // Predicated region
        $region53: #{tpu_custom_call.1} parent=11 // pred_check
          %p432 = pneg %p285
        $region54: #{tpu_custom_call.1} parent=11 // pred_check_branch
          %434 = sbr.rel (%p432) target = $region56
        $region55: #{tpu_custom_call.1} parent=11 // pred_region
          %436 = vsyncadd [#allocation12], 0
          %s437 = sshll.u32 %s11, 4
          %s438 = int_to_ptr.hbm [resolvable:$true] %s437
          %s439 = sshll.u32 [#allocation13], 4
          %s440 = int_to_ptr.vmem [resolvable:$true] %s439
          %445 = dma.hbm_to_vmem [thread:$0]  %s438, 2048, %s440, [#allocation12], 128, 128, 8
        $region56: #{tpu_custom_call.1} parent=11 // pred_fallthru
          _
        // Predicated region
        $region57: #{tpu_custom_call.1} parent=11 // pred_check
          %p446 = pneg %p306
        $region58: #{tpu_custom_call.1} parent=11 // pred_check_branch
          %448 = sbr.rel (%p446) target = $region60
        $region59: #{tpu_custom_call.1} parent=11 // pred_region
          _
        $region60: #{tpu_custom_call.1} parent=11 // pred_fallthru
          _
      $region12: #{tpu_custom_call.1} parent=5 // pred_fallthru
        _
      %p449 = scmp.lt.s32.totalorder %s28, 2
      // Predicated region
      $region61: #{tpu_custom_call.1} parent=5 // pred_check
        %p450 = pneg %p449
      $region62: #{tpu_custom_call.1} parent=5 // pred_check_branch
        %452 = sbr.rel (%p450) target = $region64
      $region63: #{tpu_custom_call.1} parent=5 // pred_region
        // Predicated region
        $region65: #{tpu_custom_call.1} parent=63 // pred_check
          %p453 = pneg %p48
        $region66: #{tpu_custom_call.1} parent=63 // pred_check_branch
          %455 = sbr.rel (%p453) target = $region68
        $region67: #{tpu_custom_call.1} parent=63 // pred_region
          %s456 = sand.u32 %s38, 1
          %s457 = scalar_lea.sflag [#allocation3], %s456
          %s458 = sand.u32 %s38, 1
          %s459 = smul.addr %s458, 104
          %s460 = scalar_lea.vmem [#allocation2], %s459
          %s461 = smul.u32 13, %s28
          %463 = vsyncadd %s457, 0
          %s464 = smul.addr %s461, 8
          %s465 = scalar_lea.hbm %s0, %s464
          %s466 = sshll.u32 %s465, 4
          %s467 = int_to_ptr.hbm [resolvable:$true] %s466
          %s468 = sshll.u32 %s460, 4
          %s469 = int_to_ptr.vmem [resolvable:$true] %s468
          %474 = dma.hbm_to_vmem [thread:$0]  %s467, 1664, %s469, %s457, 128, 128, 8
        $region68: #{tpu_custom_call.1} parent=63 // pred_fallthru
          _
      $region64: #{tpu_custom_call.1} parent=5 // pred_fallthru
        _
      %p475 = scmp.le.s32.totalorder 1, %s28
      %p476 = scmp.lt.s32.totalorder %s28, 3
      %p477 = pnand %p475, %p476
      %p478 = pneg %p477
      // Predicated region
      $region69: #{tpu_custom_call.1} parent=5 // pred_check
        _
      $region70: #{tpu_custom_call.1} parent=5 // pred_check_branch
        %480 = sbr.rel (%p477) target = $region72
      $region71: #{tpu_custom_call.1} parent=5 // pred_region
        %s481 = ssub.s32 %s28, 1
        %s482 = sand.u32 %s41, 1
        %s483 = scalar_lea.sflag [#allocation3], %s482
        %s484 = sand.u32 %s41, 1
        %s485 = smul.addr %s484, 104
        %s486 = scalar_lea.vmem [#allocation2], %s485
        // Predicated region
        $region73: #{tpu_custom_call.1} parent=71 // pred_check
          %p487 = pneg %p54
        $region74: #{tpu_custom_call.1} parent=71 // pred_check_branch
          %489 = sbr.rel (%p487) target = $region76
        $region75: #{tpu_custom_call.1} parent=71 // pred_region
          %491 = dma.done %s483, 1664
        $region76: #{tpu_custom_call.1} parent=71 // pred_fallthru
          _
        // Predicated region
        $region77: #{tpu_custom_call.1} parent=71 // pred_check
          %p492 = pneg %p75
        $region78: #{tpu_custom_call.1} parent=71 // pred_check_branch
          %494 = sbr.rel (%p492) target = $region80
        $region79: #{tpu_custom_call.1} parent=71 // pred_region
          %496 = dma.done [#allocation6], 2048
        $region80: #{tpu_custom_call.1} parent=71 // pred_fallthru
          _
        // Predicated region
        $region81: #{tpu_custom_call.1} parent=71 // pred_check
          %p497 = pneg %p117
        $region82: #{tpu_custom_call.1} parent=71 // pred_check_branch
          %499 = sbr.rel (%p497) target = $region84
        $region83: #{tpu_custom_call.1} parent=71 // pred_region
          %501 = dma.done [#allocation6], 2048
        $region84: #{tpu_custom_call.1} parent=71 // pred_fallthru
          _
        // Predicated region
        $region85: #{tpu_custom_call.1} parent=71 // pred_check
          %p502 = pneg %p159
        $region86: #{tpu_custom_call.1} parent=71 // pred_check_branch
          %504 = sbr.rel (%p502) target = $region88
        $region87: #{tpu_custom_call.1} parent=71 // pred_region
          %506 = dma.done [#allocation9], 2048
        $region88: #{tpu_custom_call.1} parent=71 // pred_fallthru
          _
        // Predicated region
        $region89: #{tpu_custom_call.1} parent=71 // pred_check
          %p507 = pneg %p201
        $region90: #{tpu_custom_call.1} parent=71 // pred_check_branch
          %509 = sbr.rel (%p507) target = $region92
        $region91: #{tpu_custom_call.1} parent=71 // pred_region
          %511 = dma.done [#allocation9], 2048
        $region92: #{tpu_custom_call.1} parent=71 // pred_fallthru
          _
        // Predicated region
        $region93: #{tpu_custom_call.1} parent=71 // pred_check
          %p512 = pneg %p243
        $region94: #{tpu_custom_call.1} parent=71 // pred_check_branch
          %514 = sbr.rel (%p512) target = $region96
        $region95: #{tpu_custom_call.1} parent=71 // pred_region
          %516 = dma.done [#allocation12], 2048
        $region96: #{tpu_custom_call.1} parent=71 // pred_fallthru
          _
        // Predicated region
        $region97: #{tpu_custom_call.1} parent=71 // pred_check
          %p517 = pneg %p285
        $region98: #{tpu_custom_call.1} parent=71 // pred_check_branch
          %519 = sbr.rel (%p517) target = $region100
        $region99: #{tpu_custom_call.1} parent=71 // pred_region
          %521 = dma.done [#allocation12], 2048
        $region100: #{tpu_custom_call.1} parent=71 // pred_fallthru
          _
        %s522 = sand.u32 %s41, 1
        %s523 = scalar_lea.sflag [#allocation3], %s522
        %s524 = sand.u32 %s41, 1
        %s525 = smul.addr %s524, 104
        %s526 = scalar_lea.vmem [#allocation2], %s525
        %p527 = pneg %p54
        %p528 = pneg %p51
        %p529 = pneg %p75
        %p530 = pneg %p72
        %p531 = pneg %p96
        %p532 = pneg %p93
        %p533 = pneg %p117
        %p534 = pneg %p114
        %p535 = pneg %p138
        %p536 = pneg %p135
        %p537 = pneg %p159
        %p538 = pneg %p156
        %p539 = pneg %p180
        %p540 = pneg %p177
        %p541 = pneg %p201
        %p542 = pneg %p198
        %p543 = pneg %p222
        %p544 = pneg %p219
        %p545 = pneg %p243
        %p546 = pneg %p240
        %p547 = pneg %p264
        %p548 = pneg %p261
        %p549 = pneg %p285
        %p550 = pneg %p282
        %p551 = pneg %p306
        %p552 = pneg %p303
        %p553 = pneg %p332
        %p554 = pneg %p329
        %s555 = sand.u32 %s319, 1
        %s556 = scalar_lea.sflag [#allocation4], %s555
        %s557 = sand.u32 %s319, 1
        %s558 = smul.addr %s557, 104
        %s559 = scalar_lea.vmem [#allocation14], %s558
        %s560 = smul.u32 13, %s33
        %s561 = smul.u32 13, %s33
        %v562 = vld [vmem:[%s486] sm:$0xff]
        %v563 = vld [vmem:[%s486 + $0x8] sm:$0xff]
        %v564 = vld [vmem:[%s486 + $0x10] sm:$0xff]
        %v565 = vld [vmem:[%s486 + $0x18] sm:$0xff]
        %v566 = vld [vmem:[%s486 + $0x20] sm:$0xff]
        %v567 = vld [vmem:[%s486 + $0x28] sm:$0xff]
        %v568 = vld [vmem:[%s486 + $0x30] sm:$0xff]
        %v569 = vld [vmem:[%s486 + $0x38] sm:$0xff]
        %v570 = vld [vmem:[%s486 + $0x40] sm:$0xff]
        %v571 = vld [vmem:[%s486 + $0x48] sm:$0xff]
        %v572 = vld [vmem:[%s486 + $0x50] sm:$0xff]
        %v573 = vld [vmem:[%s486 + $0x58] sm:$0xff]
        %v574 = vld [vmem:[%s486 + $0x60] sm:$0xff]
        %v575 = vld [vmem:[#allocation5] sm:$0xff]
        %v576 = vld [vmem:[#allocation5 + $0x8] sm:$0xff]
        %v577 = vld [vmem:[#allocation5 + $0x10] sm:$0xff]
        %v578 = vld [vmem:[#allocation5 + $0x18] sm:$0xff]
        %v579 = vld [vmem:[#allocation5 + $0x20] sm:$0xff]
        %v580 = vld [vmem:[#allocation5 + $0x28] sm:$0xff]
        %v581 = vld [vmem:[#allocation5 + $0x30] sm:$0xff]
        %v582 = vld [vmem:[#allocation5 + $0x38] sm:$0xff]
        %v583 = vld [vmem:[#allocation5 + $0x40] sm:$0xff]
        %v584 = vld [vmem:[#allocation5 + $0x48] sm:$0xff]
        %v585 = vld [vmem:[#allocation5 + $0x50] sm:$0xff]
        %v586 = vld [vmem:[#allocation5 + $0x58] sm:$0xff]
        %v587 = vld [vmem:[#allocation5 + $0x60] sm:$0xff]
        %v588 = vld [vmem:[#allocation5 + $0x68] sm:$0xff]
        %v589 = vld [vmem:[#allocation5 + $0x70] sm:$0xff]
        %v590 = vld [vmem:[#allocation5 + $0x78] sm:$0xff]
        %v591 = vld [vmem:[%s2] sm:$0x1]
        %v593 = vperm.slane %v591, 0
        %595 = vmatpush.msra.mxu0 %v590
        %596 = vmatpush.msra.mxu0 %v589
        %597 = vmatpush.msra.mxu0 %v588
        %598 = vmatpush.msra.mxu0 %v587
        %599 = vmatpush.msra.mxu0 %v586
        %600 = vmatpush.msra.mxu0 %v585
        %601 = vmatpush.msra.mxu0 %v584
        %602 = vmatpush.msra.mxu0 %v583
        %603 = vmatpush.msra.mxu0 %v582
        %604 = vmatpush.msra.mxu0 %v581
        %605 = vmatpush.msra.mxu0 %v580
        %606 = vmatpush.msra.mxu0 %v579
        %607 = vmatpush.msra.mxu0 %v578
        %608 = vmatpush.msra.mxu0 %v577
        %609 = vmatpush.msra.mxu0 %v576
        %610 = vmatpush.msra.mxu0 %v575
        %611 = vmatmul.f32.gmra.mxu0 %v562
        %v612 = vpop.f32.mrf.mxu0
        %v613 = vadd.f32 %v593, %v612
        %614 = vmatmul.f32.gmra.mxu0 %v563
        %v615 = vpop.f32.mrf.mxu0
        %v616 = vadd.f32 %v593, %v615
        %617 = vmatmul.f32.gmra.mxu0 %v564
        %v618 = vpop.f32.mrf.mxu0
        %v619 = vadd.f32 %v593, %v618
        %620 = vmatmul.f32.gmra.mxu0 %v565
        %v621 = vpop.f32.mrf.mxu0
        %v622 = vadd.f32 %v593, %v621
        %623 = vmatmul.f32.gmra.mxu0 %v566
        %v624 = vpop.f32.mrf.mxu0
        %v625 = vadd.f32 %v593, %v624
        %626 = vmatmul.f32.gmra.mxu0 %v567
        %v627 = vpop.f32.mrf.mxu0
        %v628 = vadd.f32 %v593, %v627
        %629 = vmatmul.f32.gmra.mxu0 %v568
        %v630 = vpop.f32.mrf.mxu0
        %v631 = vadd.f32 %v593, %v630
        %632 = vmatmul.f32.gmra.mxu0 %v569
        %v633 = vpop.f32.mrf.mxu0
        %v634 = vadd.f32 %v593, %v633
        %635 = vmatmul.f32.gmra.mxu0 %v570
        %v636 = vpop.f32.mrf.mxu0
        %v637 = vadd.f32 %v593, %v636
        %638 = vmatmul.f32.gmra.mxu0 %v571
        %v639 = vpop.f32.mrf.mxu0
        %v640 = vadd.f32 %v593, %v639
        %641 = vmatmul.f32.gmra.mxu0 %v572
        %v642 = vpop.f32.mrf.mxu0
        %v643 = vadd.f32 %v593, %v642
        %644 = vmatmul.f32.gmra.mxu0 %v573
        %v645 = vpop.f32.mrf.mxu0
        %v646 = vadd.f32 %v593, %v645
        %647 = vmatmul.f32.gmra.mxu0 %v574
        %v648 = vpop.f32.mrf.mxu0
        %v649 = vadd.f32 %v593, %v648
        %650 = vdwg.mxu0
        %v651 = vmax.f32 %v613, 0.0
        %v652 = vmax.f32 %v616, 0.0
        %v653 = vmax.f32 %v619, 0.0
        %v654 = vmax.f32 %v622, 0.0
        %v655 = vmax.f32 %v625, 0.0
        %v656 = vmax.f32 %v628, 0.0
        %v657 = vmax.f32 %v631, 0.0
        %v658 = vmax.f32 %v634, 0.0
        %v659 = vmax.f32 %v637, 0.0
        %v660 = vmax.f32 %v640, 0.0
        %v661 = vmax.f32 %v643, 0.0
        %v662 = vmax.f32 %v646, 0.0
        %v663 = vmax.f32 %v649, 0.0
        %v664 = vld [vmem:[#allocation7] sm:$0xff]
        %v665 = vld [vmem:[#allocation7 + $0x8] sm:$0xff]
        %v666 = vld [vmem:[#allocation7 + $0x10] sm:$0xff]
        %v667 = vld [vmem:[#allocation7 + $0x18] sm:$0xff]
        %v668 = vld [vmem:[#allocation7 + $0x20] sm:$0xff]
        %v669 = vld [vmem:[#allocation7 + $0x28] sm:$0xff]
        %v670 = vld [vmem:[#allocation7 + $0x30] sm:$0xff]
        %v671 = vld [vmem:[#allocation7 + $0x38] sm:$0xff]
        %v672 = vld [vmem:[#allocation7 + $0x40] sm:$0xff]
        %v673 = vld [vmem:[#allocation7 + $0x48] sm:$0xff]
        %v674 = vld [vmem:[#allocation7 + $0x50] sm:$0xff]
        %v675 = vld [vmem:[#allocation7 + $0x58] sm:$0xff]
        %v676 = vld [vmem:[#allocation7 + $0x60] sm:$0xff]
        %v677 = vld [vmem:[#allocation7 + $0x68] sm:$0xff]
        %v678 = vld [vmem:[#allocation7 + $0x70] sm:$0xff]
        %v679 = vld [vmem:[#allocation7 + $0x78] sm:$0xff]
        %v680 = vld [vmem:[%s4] sm:$0x1]
        %v682 = vperm.slane %v680, 0
        %684 = vmatpush.msra.mxu0 %v679
        %685 = vmatpush.msra.mxu0 %v678
        %686 = vmatpush.msra.mxu0 %v677
        %687 = vmatpush.msra.mxu0 %v676
        %688 = vmatpush.msra.mxu0 %v675
        %689 = vmatpush.msra.mxu0 %v674
        %690 = vmatpush.msra.mxu0 %v673
        %691 = vmatpush.msra.mxu0 %v672
        %692 = vmatpush.msra.mxu0 %v671
        %693 = vmatpush.msra.mxu0 %v670
        %694 = vmatpush.msra.mxu0 %v669
        %695 = vmatpush.msra.mxu0 %v668
        %696 = vmatpush.msra.mxu0 %v667
        %697 = vmatpush.msra.mxu0 %v666
        %698 = vmatpush.msra.mxu0 %v665
        %699 = vmatpush.msra.mxu0 %v664
        %700 = vmatmul.f32.gmra.mxu0 %v651
        %v701 = vpop.f32.mrf.mxu0
        %v702 = vadd.f32 %v682, %v701
        %703 = vmatmul.f32.gmra.mxu0 %v652
        %v704 = vpop.f32.mrf.mxu0
        %v705 = vadd.f32 %v682, %v704
        %706 = vmatmul.f32.gmra.mxu0 %v653
        %v707 = vpop.f32.mrf.mxu0
        %v708 = vadd.f32 %v682, %v707
        %709 = vmatmul.f32.gmra.mxu0 %v654
        %v710 = vpop.f32.mrf.mxu0
        %v711 = vadd.f32 %v682, %v710
        %712 = vmatmul.f32.gmra.mxu0 %v655
        %v713 = vpop.f32.mrf.mxu0
        %v714 = vadd.f32 %v682, %v713
        %715 = vmatmul.f32.gmra.mxu0 %v656
        %v716 = vpop.f32.mrf.mxu0
        %v717 = vadd.f32 %v682, %v716
        %718 = vmatmul.f32.gmra.mxu0 %v657
        %v719 = vpop.f32.mrf.mxu0
        %v720 = vadd.f32 %v682, %v719
        %721 = vmatmul.f32.gmra.mxu0 %v658
        %v722 = vpop.f32.mrf.mxu0
        %v723 = vadd.f32 %v682, %v722
        %724 = vmatmul.f32.gmra.mxu0 %v659
        %v725 = vpop.f32.mrf.mxu0
        %v726 = vadd.f32 %v682, %v725
        %727 = vmatmul.f32.gmra.mxu0 %v660
        %v728 = vpop.f32.mrf.mxu0
        %v729 = vadd.f32 %v682, %v728
        %730 = vmatmul.f32.gmra.mxu0 %v661
        %v731 = vpop.f32.mrf.mxu0
        %v732 = vadd.f32 %v682, %v731
        %733 = vmatmul.f32.gmra.mxu0 %v662
        %v734 = vpop.f32.mrf.mxu0
        %v735 = vadd.f32 %v682, %v734
        %736 = vmatmul.f32.gmra.mxu0 %v663
        %v737 = vpop.f32.mrf.mxu0
        %v738 = vadd.f32 %v682, %v737
        %739 = vdwg.mxu0
        %v740 = vmax.f32 %v702, 0.0
        %v741 = vmax.f32 %v705, 0.0
        %v742 = vmax.f32 %v708, 0.0
        %v743 = vmax.f32 %v711, 0.0
        %v744 = vmax.f32 %v714, 0.0
        %v745 = vmax.f32 %v717, 0.0
        %v746 = vmax.f32 %v720, 0.0
        %v747 = vmax.f32 %v723, 0.0
        %v748 = vmax.f32 %v726, 0.0
        %v749 = vmax.f32 %v729, 0.0
        %v750 = vmax.f32 %v732, 0.0
        %v751 = vmax.f32 %v735, 0.0
        %v752 = vmax.f32 %v738, 0.0
        %v753 = vld [vmem:[#allocation8] sm:$0xff]
        %v754 = vld [vmem:[#allocation8 + $0x8] sm:$0xff]
        %v755 = vld [vmem:[#allocation8 + $0x10] sm:$0xff]
        %v756 = vld [vmem:[#allocation8 + $0x18] sm:$0xff]
        %v757 = vld [vmem:[#allocation8 + $0x20] sm:$0xff]
        %v758 = vld [vmem:[#allocation8 + $0x28] sm:$0xff]
        %v759 = vld [vmem:[#allocation8 + $0x30] sm:$0xff]
        %v760 = vld [vmem:[#allocation8 + $0x38] sm:$0xff]
        %v761 = vld [vmem:[#allocation8 + $0x40] sm:$0xff]
        %v762 = vld [vmem:[#allocation8 + $0x48] sm:$0xff]
        %v763 = vld [vmem:[#allocation8 + $0x50] sm:$0xff]
        %v764 = vld [vmem:[#allocation8 + $0x58] sm:$0xff]
        %v765 = vld [vmem:[#allocation8 + $0x60] sm:$0xff]
        %v766 = vld [vmem:[#allocation8 + $0x68] sm:$0xff]
        %v767 = vld [vmem:[#allocation8 + $0x70] sm:$0xff]
        %v768 = vld [vmem:[#allocation8 + $0x78] sm:$0xff]
        %v769 = vld [vmem:[%s6] sm:$0x1]
        %v771 = vperm.slane %v769, 0
        %773 = vmatpush.msra.mxu0 %v768
        %774 = vmatpush.msra.mxu0 %v767
        %775 = vmatpush.msra.mxu0 %v766
        %776 = vmatpush.msra.mxu0 %v765
        %777 = vmatpush.msra.mxu0 %v764
        %778 = vmatpush.msra.mxu0 %v763
        %779 = vmatpush.msra.mxu0 %v762
        %780 = vmatpush.msra.mxu0 %v761
        %781 = vmatpush.msra.mxu0 %v760
        %782 = vmatpush.msra.mxu0 %v759
        %783 = vmatpush.msra.mxu0 %v758
        %784 = vmatpush.msra.mxu0 %v757
        %785 = vmatpush.msra.mxu0 %v756
        %786 = vmatpush.msra.mxu0 %v755
        %787 = vmatpush.msra.mxu0 %v754
        %788 = vmatpush.msra.mxu0 %v753
        %789 = vmatmul.f32.gmra.mxu0 %v740
        %v790 = vpop.f32.mrf.mxu0
        %v791 = vadd.f32 %v771, %v790
        %792 = vmatmul.f32.gmra.mxu0 %v741
        %v793 = vpop.f32.mrf.mxu0
        %v794 = vadd.f32 %v771, %v793
        %795 = vmatmul.f32.gmra.mxu0 %v742
        %v796 = vpop.f32.mrf.mxu0
        %v797 = vadd.f32 %v771, %v796
        %798 = vmatmul.f32.gmra.mxu0 %v743
        %v799 = vpop.f32.mrf.mxu0
        %v800 = vadd.f32 %v771, %v799
        %801 = vmatmul.f32.gmra.mxu0 %v744
        %v802 = vpop.f32.mrf.mxu0
        %v803 = vadd.f32 %v771, %v802
        %804 = vmatmul.f32.gmra.mxu0 %v745
        %v805 = vpop.f32.mrf.mxu0
        %v806 = vadd.f32 %v771, %v805
        %807 = vmatmul.f32.gmra.mxu0 %v746
        %v808 = vpop.f32.mrf.mxu0
        %v809 = vadd.f32 %v771, %v808
        %810 = vmatmul.f32.gmra.mxu0 %v747
        %v811 = vpop.f32.mrf.mxu0
        %v812 = vadd.f32 %v771, %v811
        %813 = vmatmul.f32.gmra.mxu0 %v748
        %v814 = vpop.f32.mrf.mxu0
        %v815 = vadd.f32 %v771, %v814
        %816 = vmatmul.f32.gmra.mxu0 %v749
        %v817 = vpop.f32.mrf.mxu0
        %v818 = vadd.f32 %v771, %v817
        %819 = vmatmul.f32.gmra.mxu0 %v750
        %v820 = vpop.f32.mrf.mxu0
        %v821 = vadd.f32 %v771, %v820
        %822 = vmatmul.f32.gmra.mxu0 %v751
        %v823 = vpop.f32.mrf.mxu0
        %v824 = vadd.f32 %v771, %v823
        %825 = vmatmul.f32.gmra.mxu0 %v752
        %v826 = vpop.f32.mrf.mxu0
        %v827 = vadd.f32 %v771, %v826
        %828 = vdwg.mxu0
        %v829 = vadd.f32 %v791, %v651
        %v830 = vadd.f32 %v794, %v652
        %v831 = vadd.f32 %v797, %v653
        %v832 = vadd.f32 %v800, %v654
        %v833 = vadd.f32 %v803, %v655
        %v834 = vadd.f32 %v806, %v656
        %v835 = vadd.f32 %v809, %v657
        %v836 = vadd.f32 %v812, %v658
        %v837 = vadd.f32 %v815, %v659
        %v838 = vadd.f32 %v818, %v660
        %v839 = vadd.f32 %v821, %v661
        %v840 = vadd.f32 %v824, %v662
        %v841 = vadd.f32 %v827, %v663
        %v842 = vmax.f32 %v829, 0.0
        %v843 = vmax.f32 %v830, 0.0
        %v844 = vmax.f32 %v831, 0.0
        %v845 = vmax.f32 %v832, 0.0
        %v846 = vmax.f32 %v833, 0.0
        %v847 = vmax.f32 %v834, 0.0
        %v848 = vmax.f32 %v835, 0.0
        %v849 = vmax.f32 %v836, 0.0
        %v850 = vmax.f32 %v837, 0.0
        %v851 = vmax.f32 %v838, 0.0
        %v852 = vmax.f32 %v839, 0.0
        %v853 = vmax.f32 %v840, 0.0
        %v854 = vmax.f32 %v841, 0.0
        %v855 = vld [vmem:[#allocation10] sm:$0xff]
        %v856 = vld [vmem:[#allocation10 + $0x8] sm:$0xff]
        %v857 = vld [vmem:[#allocation10 + $0x10] sm:$0xff]
        %v858 = vld [vmem:[#allocation10 + $0x18] sm:$0xff]
        %v859 = vld [vmem:[#allocation10 + $0x20] sm:$0xff]
        %v860 = vld [vmem:[#allocation10 + $0x28] sm:$0xff]
        %v861 = vld [vmem:[#allocation10 + $0x30] sm:$0xff]
        %v862 = vld [vmem:[#allocation10 + $0x38] sm:$0xff]
        %v863 = vld [vmem:[#allocation10 + $0x40] sm:$0xff]
        %v864 = vld [vmem:[#allocation10 + $0x48] sm:$0xff]
        %v865 = vld [vmem:[#allocation10 + $0x50] sm:$0xff]
        %v866 = vld [vmem:[#allocation10 + $0x58] sm:$0xff]
        %v867 = vld [vmem:[#allocation10 + $0x60] sm:$0xff]
        %v868 = vld [vmem:[#allocation10 + $0x68] sm:$0xff]
        %v869 = vld [vmem:[#allocation10 + $0x70] sm:$0xff]
        %v870 = vld [vmem:[#allocation10 + $0x78] sm:$0xff]
        %v871 = vld [vmem:[%s8] sm:$0x1]
        %v873 = vperm.slane %v871, 0
        %875 = vmatpush.msra.mxu0 %v870
        %876 = vmatpush.msra.mxu0 %v869
        %877 = vmatpush.msra.mxu0 %v868
        %878 = vmatpush.msra.mxu0 %v867
        %879 = vmatpush.msra.mxu0 %v866
        %880 = vmatpush.msra.mxu0 %v865
        %881 = vmatpush.msra.mxu0 %v864
        %882 = vmatpush.msra.mxu0 %v863
        %883 = vmatpush.msra.mxu0 %v862
        %884 = vmatpush.msra.mxu0 %v861
        %885 = vmatpush.msra.mxu0 %v860
        %886 = vmatpush.msra.mxu0 %v859
        %887 = vmatpush.msra.mxu0 %v858
        %888 = vmatpush.msra.mxu0 %v857
        %889 = vmatpush.msra.mxu0 %v856
        %890 = vmatpush.msra.mxu0 %v855
        %891 = vmatmul.f32.gmra.mxu0 %v842
        %v892 = vpop.f32.mrf.mxu0
        %v893 = vadd.f32 %v873, %v892
        %894 = vmatmul.f32.gmra.mxu0 %v843
        %v895 = vpop.f32.mrf.mxu0
        %v896 = vadd.f32 %v873, %v895
        %897 = vmatmul.f32.gmra.mxu0 %v844
        %v898 = vpop.f32.mrf.mxu0
        %v899 = vadd.f32 %v873, %v898
        %900 = vmatmul.f32.gmra.mxu0 %v845
        %v901 = vpop.f32.mrf.mxu0
        %v902 = vadd.f32 %v873, %v901
        %903 = vmatmul.f32.gmra.mxu0 %v846
        %v904 = vpop.f32.mrf.mxu0
        %v905 = vadd.f32 %v873, %v904
        %906 = vmatmul.f32.gmra.mxu0 %v847
        %v907 = vpop.f32.mrf.mxu0
        %v908 = vadd.f32 %v873, %v907
        %909 = vmatmul.f32.gmra.mxu0 %v848
        %v910 = vpop.f32.mrf.mxu0
        %v911 = vadd.f32 %v873, %v910
        %912 = vmatmul.f32.gmra.mxu0 %v849
        %v913 = vpop.f32.mrf.mxu0
        %v914 = vadd.f32 %v873, %v913
        %915 = vmatmul.f32.gmra.mxu0 %v850
        %v916 = vpop.f32.mrf.mxu0
        %v917 = vadd.f32 %v873, %v916
        %918 = vmatmul.f32.gmra.mxu0 %v851
        %v919 = vpop.f32.mrf.mxu0
        %v920 = vadd.f32 %v873, %v919
        %921 = vmatmul.f32.gmra.mxu0 %v852
        %v922 = vpop.f32.mrf.mxu0
        %v923 = vadd.f32 %v873, %v922
        %924 = vmatmul.f32.gmra.mxu0 %v853
        %v925 = vpop.f32.mrf.mxu0
        %v926 = vadd.f32 %v873, %v925
        %927 = vmatmul.f32.gmra.mxu0 %v854
        %v928 = vpop.f32.mrf.mxu0
        %v929 = vadd.f32 %v873, %v928
        %930 = vdwg.mxu0
        %v931 = vmax.f32 %v893, 0.0
        %v932 = vmax.f32 %v896, 0.0
        %v933 = vmax.f32 %v899, 0.0
        %v934 = vmax.f32 %v902, 0.0
        %v935 = vmax.f32 %v905, 0.0
        %v936 = vmax.f32 %v908, 0.0
        %v937 = vmax.f32 %v911, 0.0
        %v938 = vmax.f32 %v914, 0.0
        %v939 = vmax.f32 %v917, 0.0
        %v940 = vmax.f32 %v920, 0.0
        %v941 = vmax.f32 %v923, 0.0
        %v942 = vmax.f32 %v926, 0.0
        %v943 = vmax.f32 %v929, 0.0
        %v944 = vld [vmem:[#allocation11] sm:$0xff]
        %v945 = vld [vmem:[#allocation11 + $0x8] sm:$0xff]
        %v946 = vld [vmem:[#allocation11 + $0x10] sm:$0xff]
        %v947 = vld [vmem:[#allocation11 + $0x18] sm:$0xff]
        %v948 = vld [vmem:[#allocation11 + $0x20] sm:$0xff]
        %v949 = vld [vmem:[#allocation11 + $0x28] sm:$0xff]
        %v950 = vld [vmem:[#allocation11 + $0x30] sm:$0xff]
        %v951 = vld [vmem:[#allocation11 + $0x38] sm:$0xff]
        %v952 = vld [vmem:[#allocation11 + $0x40] sm:$0xff]
        %v953 = vld [vmem:[#allocation11 + $0x48] sm:$0xff]
        %v954 = vld [vmem:[#allocation11 + $0x50] sm:$0xff]
        %v955 = vld [vmem:[#allocation11 + $0x58] sm:$0xff]
        %v956 = vld [vmem:[#allocation11 + $0x60] sm:$0xff]
        %v957 = vld [vmem:[#allocation11 + $0x68] sm:$0xff]
        %v958 = vld [vmem:[#allocation11 + $0x70] sm:$0xff]
        %v959 = vld [vmem:[#allocation11 + $0x78] sm:$0xff]
        %v960 = vld [vmem:[%s10] sm:$0x1]
        %v962 = vperm.slane %v960, 0
        %964 = vmatpush.msra.mxu0 %v959
        %965 = vmatpush.msra.mxu0 %v958
        %966 = vmatpush.msra.mxu0 %v957
        %967 = vmatpush.msra.mxu0 %v956
        %968 = vmatpush.msra.mxu0 %v955
        %969 = vmatpush.msra.mxu0 %v954
        %970 = vmatpush.msra.mxu0 %v953
        %971 = vmatpush.msra.mxu0 %v952
        %972 = vmatpush.msra.mxu0 %v951
        %973 = vmatpush.msra.mxu0 %v950
        %974 = vmatpush.msra.mxu0 %v949
        %975 = vmatpush.msra.mxu0 %v948
        %976 = vmatpush.msra.mxu0 %v947
        %977 = vmatpush.msra.mxu0 %v946
        %978 = vmatpush.msra.mxu0 %v945
        %979 = vmatpush.msra.mxu0 %v944
        %980 = vmatmul.f32.gmra.mxu0 %v931
        %v981 = vpop.f32.mrf.mxu0
        %v982 = vadd.f32 %v962, %v981
        %983 = vmatmul.f32.gmra.mxu0 %v932
        %v984 = vpop.f32.mrf.mxu0
        %v985 = vadd.f32 %v962, %v984
        %986 = vmatmul.f32.gmra.mxu0 %v933
        %v987 = vpop.f32.mrf.mxu0
        %v988 = vadd.f32 %v962, %v987
        %989 = vmatmul.f32.gmra.mxu0 %v934
        %v990 = vpop.f32.mrf.mxu0
        %v991 = vadd.f32 %v962, %v990
        %992 = vmatmul.f32.gmra.mxu0 %v935
        %v993 = vpop.f32.mrf.mxu0
        %v994 = vadd.f32 %v962, %v993
        %995 = vmatmul.f32.gmra.mxu0 %v936
        %v996 = vpop.f32.mrf.mxu0
        %v997 = vadd.f32 %v962, %v996
        %998 = vmatmul.f32.gmra.mxu0 %v937
        %v999 = vpop.f32.mrf.mxu0
        %v1000 = vadd.f32 %v962, %v999
        %1001 = vmatmul.f32.gmra.mxu0 %v938
        %v1002 = vpop.f32.mrf.mxu0
        %v1003 = vadd.f32 %v962, %v1002
        %1004 = vmatmul.f32.gmra.mxu0 %v939
        %v1005 = vpop.f32.mrf.mxu0
        %v1006 = vadd.f32 %v962, %v1005
        %1007 = vmatmul.f32.gmra.mxu0 %v940
        %v1008 = vpop.f32.mrf.mxu0
        %v1009 = vadd.f32 %v962, %v1008
        %1010 = vmatmul.f32.gmra.mxu0 %v941
        %v1011 = vpop.f32.mrf.mxu0
        %v1012 = vadd.f32 %v962, %v1011
        %1013 = vmatmul.f32.gmra.mxu0 %v942
        %v1014 = vpop.f32.mrf.mxu0
        %v1015 = vadd.f32 %v962, %v1014
        %1016 = vmatmul.f32.gmra.mxu0 %v943
        %v1017 = vpop.f32.mrf.mxu0
        %v1018 = vadd.f32 %v962, %v1017
        %1019 = vdwg.mxu0
        %v1020 = vadd.f32 %v982, %v842
        %v1021 = vadd.f32 %v985, %v843
        %v1022 = vadd.f32 %v988, %v844
        %v1023 = vadd.f32 %v991, %v845
        %v1024 = vadd.f32 %v994, %v846
        %v1025 = vadd.f32 %v997, %v847
        %v1026 = vadd.f32 %v1000, %v848
        %v1027 = vadd.f32 %v1003, %v849
        %v1028 = vadd.f32 %v1006, %v850
        %v1029 = vadd.f32 %v1009, %v851
        %v1030 = vadd.f32 %v1012, %v852
        %v1031 = vadd.f32 %v1015, %v853
        %v1032 = vadd.f32 %v1018, %v854
        %v1033 = vmax.f32 %v1020, 0.0
        %v1034 = vmax.f32 %v1021, 0.0
        %v1035 = vmax.f32 %v1022, 0.0
        %v1036 = vmax.f32 %v1023, 0.0
        %v1037 = vmax.f32 %v1024, 0.0
        %v1038 = vmax.f32 %v1025, 0.0
        %v1039 = vmax.f32 %v1026, 0.0
        %v1040 = vmax.f32 %v1027, 0.0
        %v1041 = vmax.f32 %v1028, 0.0
        %v1042 = vmax.f32 %v1029, 0.0
        %v1043 = vmax.f32 %v1030, 0.0
        %v1044 = vmax.f32 %v1031, 0.0
        %v1045 = vmax.f32 %v1032, 0.0
        %v1046 = vld [vmem:[#allocation13] sm:$0xff]
        %v1047 = vld [vmem:[#allocation13 + $0x8] sm:$0xff]
        %v1048 = vld [vmem:[#allocation13 + $0x10] sm:$0xff]
        %v1049 = vld [vmem:[#allocation13 + $0x18] sm:$0xff]
        %v1050 = vld [vmem:[#allocation13 + $0x20] sm:$0xff]
        %v1051 = vld [vmem:[#allocation13 + $0x28] sm:$0xff]
        %v1052 = vld [vmem:[#allocation13 + $0x30] sm:$0xff]
        %v1053 = vld [vmem:[#allocation13 + $0x38] sm:$0xff]
        %v1054 = vld [vmem:[#allocation13 + $0x40] sm:$0xff]
        %v1055 = vld [vmem:[#allocation13 + $0x48] sm:$0xff]
        %v1056 = vld [vmem:[#allocation13 + $0x50] sm:$0xff]
        %v1057 = vld [vmem:[#allocation13 + $0x58] sm:$0xff]
        %v1058 = vld [vmem:[#allocation13 + $0x60] sm:$0xff]
        %v1059 = vld [vmem:[#allocation13 + $0x68] sm:$0xff]
        %v1060 = vld [vmem:[#allocation13 + $0x70] sm:$0xff]
        %v1061 = vld [vmem:[#allocation13 + $0x78] sm:$0xff]
        %v1062 = vld [vmem:[%s12] sm:$0x1]
        %v1064 = vperm.slane %v1062, 0
        %1066 = vmatpush.msra.mxu0 %v1061
        %1067 = vmatpush.msra.mxu0 %v1060
        %1068 = vmatpush.msra.mxu0 %v1059
        %1069 = vmatpush.msra.mxu0 %v1058
        %1070 = vmatpush.msra.mxu0 %v1057
        %1071 = vmatpush.msra.mxu0 %v1056
        %1072 = vmatpush.msra.mxu0 %v1055
        %1073 = vmatpush.msra.mxu0 %v1054
        %1074 = vmatpush.msra.mxu0 %v1053
        %1075 = vmatpush.msra.mxu0 %v1052
        %1076 = vmatpush.msra.mxu0 %v1051
        %1077 = vmatpush.msra.mxu0 %v1050
        %1078 = vmatpush.msra.mxu0 %v1049
        %1079 = vmatpush.msra.mxu0 %v1048
        %1080 = vmatpush.msra.mxu0 %v1047
        %1081 = vmatpush.msra.mxu0 %v1046
        %1082 = vmatmul.f32.gmra.mxu0 %v1033
        %v1083 = vpop.f32.mrf.mxu0
        %v1084 = vadd.f32 %v1064, %v1083
        %1085 = vmatmul.f32.gmra.mxu0 %v1034
        %v1086 = vpop.f32.mrf.mxu0
        %v1087 = vadd.f32 %v1064, %v1086
        %1088 = vmatmul.f32.gmra.mxu0 %v1035
        %v1089 = vpop.f32.mrf.mxu0
        %v1090 = vadd.f32 %v1064, %v1089
        %1091 = vmatmul.f32.gmra.mxu0 %v1036
        %v1092 = vpop.f32.mrf.mxu0
        %v1093 = vadd.f32 %v1064, %v1092
        %1094 = vmatmul.f32.gmra.mxu0 %v1037
        %v1095 = vpop.f32.mrf.mxu0
        %v1096 = vadd.f32 %v1064, %v1095
        %1097 = vmatmul.f32.gmra.mxu0 %v1038
        %v1098 = vpop.f32.mrf.mxu0
        %v1099 = vadd.f32 %v1064, %v1098
        %1100 = vmatmul.f32.gmra.mxu0 %v1039
        %v1101 = vpop.f32.mrf.mxu0
        %v1102 = vadd.f32 %v1064, %v1101
        %1103 = vmatmul.f32.gmra.mxu0 %v1040
        %v1104 = vpop.f32.mrf.mxu0
        %v1105 = vadd.f32 %v1064, %v1104
        %1106 = vmatmul.f32.gmra.mxu0 %v1041
        %v1107 = vpop.f32.mrf.mxu0
        %v1108 = vadd.f32 %v1064, %v1107
        %1109 = vmatmul.f32.gmra.mxu0 %v1042
        %v1110 = vpop.f32.mrf.mxu0
        %v1111 = vadd.f32 %v1064, %v1110
        %1112 = vmatmul.f32.gmra.mxu0 %v1043
        %v1113 = vpop.f32.mrf.mxu0
        %v1114 = vadd.f32 %v1064, %v1113
        %1115 = vmatmul.f32.gmra.mxu0 %v1044
        %v1116 = vpop.f32.mrf.mxu0
        %v1117 = vadd.f32 %v1064, %v1116
        %1118 = vmatmul.f32.gmra.mxu0 %v1045
        %v1119 = vpop.f32.mrf.mxu0
        %v1120 = vadd.f32 %v1064, %v1119
        %1121 = vdwg.mxu0
        %1122 = vst [vmem:[%s559] sm:$0xff] %v1084
        %1123 = vst [vmem:[%s559 + $0x8] sm:$0xff] %v1087
        %1124 = vst [vmem:[%s559 + $0x10] sm:$0xff] %v1090
        %1125 = vst [vmem:[%s559 + $0x18] sm:$0xff] %v1093
        %1126 = vst [vmem:[%s559 + $0x20] sm:$0xff] %v1096
        %1127 = vst [vmem:[%s559 + $0x28] sm:$0xff] %v1099
        %1128 = vst [vmem:[%s559 + $0x30] sm:$0xff] %v1102
        %1129 = vst [vmem:[%s559 + $0x38] sm:$0xff] %v1105
        %1130 = vst [vmem:[%s559 + $0x40] sm:$0xff] %v1108
        %1131 = vst [vmem:[%s559 + $0x48] sm:$0xff] %v1111
        %1132 = vst [vmem:[%s559 + $0x50] sm:$0xff] %v1114
        %1133 = vst [vmem:[%s559 + $0x58] sm:$0xff] %v1117
        %1134 = vst [vmem:[%s559 + $0x60] sm:$0xff] %v1120
        %s1135 = sand.u32 %s319, 1
        %s1136 = scalar_lea.sflag [#allocation4], %s1135
        %s1137 = sand.u32 %s319, 1
        %s1138 = smul.addr %s1137, 104
        %s1139 = scalar_lea.vmem [#allocation14], %s1138
        // Predicated region
        $region101: #{tpu_custom_call.1} parent=71 // pred_check
          %p1140 = pneg %p329
        $region102: #{tpu_custom_call.1} parent=71 // pred_check_branch
          %1142 = sbr.rel (%p1140) target = $region104
        $region103: #{tpu_custom_call.1} parent=71 // pred_region
          %s1143 = smul.u32 13, %s33
          %1145 = vsyncadd %s1136, 0
          %s1146 = smul.addr %s1143, 8
          %s1147 = scalar_lea.hbm %s13, %s1146
          %s1148 = sshll.u32 %s1139, 4
          %s1149 = int_to_ptr.vmem [resolvable:$true] %s1148
          %s1150 = sshll.u32 %s1147, 4
          %s1151 = int_to_ptr.hbm [resolvable:$true] %s1150
          %1156 = dma.vmem_to_hbm [thread:$0]  %s1149, 1664, %s1151, %s1136, 128, 128, 8
        $region104: #{tpu_custom_call.1} parent=71 // pred_fallthru
          _
      $region72: #{tpu_custom_call.1} parent=5 // pred_fallthru
        _
      %p1157 = scmp.le.s32.totalorder 2, %s28
      // Predicated region
      $region105: #{tpu_custom_call.1} parent=5 // pred_check
        %p1158 = pneg %p1157
      $region106: #{tpu_custom_call.1} parent=5 // pred_check_branch
        %1160 = sbr.rel (%p1158) target = $region108
      $region107: #{tpu_custom_call.1} parent=5 // pred_region
        %s1161 = ssub.s32 %s28, 2
        // Predicated region
        $region109: #{tpu_custom_call.1} parent=107 // pred_check
          %p1162 = pneg %p335
        $region110: #{tpu_custom_call.1} parent=107 // pred_check_branch
          %1164 = sbr.rel (%p1162) target = $region112
        $region111: #{tpu_custom_call.1} parent=107 // pred_region
          %s1165 = sand.u32 %s320, 1
          %s1166 = scalar_lea.sflag [#allocation4], %s1165
          %s1167 = sand.u32 %s320, 1
          %s1168 = smul.addr %s1167, 104
          %s1169 = scalar_lea.vmem [#allocation14], %s1168
          %1171 = dma.done %s1166, 1664
        $region112: #{tpu_custom_call.1} parent=107 // pred_fallthru
          _
      $region108: #{tpu_custom_call.1} parent=5 // pred_fallthru
        _
    $region6: #{tpu_custom_call.1} parent=1 // loop_footer
      %s32 = sadd.s32 1, %s28
    $region7: #{tpu_custom_call.1} parent=1 // loop_footer_branch
      %27 = sbr.rel target = $region3
    $region8: #{tpu_custom_call.1} parent=1 // loop_exit
      _
    %1172 = vsyncpa [#allocation3], 1
    %s1173 = scalar_lea.sflag [#allocation3], 1
    %1174 = vsyncpa %s1173, 1
    %1175 = vsyncpa [#allocation6], 1
    %1176 = vsyncpa [#allocation9], 1
    %1177 = vsyncpa [#allocation12], 1
    %1178 = vsyncpa [#allocation4], 1
    %s1179 = scalar_lea.sflag [#allocation4], 1
    %1180 = vsyncpa %s1179, 1

// kernel: tpu_custom_call.1
$region0: #{tpu_custom_call.1}
  #allocation0 [shape = 'u32[]', space=smem, size = 0x4, offset = 0x4, fixed_abs, tag = 'smem constant byte address 0x4 - core index']
  #allocation1 [shape = 'u32[72,128]{1,0:T(1,128)}', space=vmem, size = 0x9000, scoped, tag = 'internal scratch']
  %s0 = inlined_call_operand.hbm [shape: f32[208,128], index: 0, kind: input, shape index: {}]
  %s1 = inlined_call_operand.hbm [shape: f32[128,128], index: 1, kind: input, shape index: {}]
  %s2 = inlined_call_operand.vmem [shape: f32[1,128], index: 2, kind: input, shape index: {}]
  %s3 = inlined_call_operand.hbm [shape: f32[128,128], index: 3, kind: input, shape index: {}]
  %s4 = inlined_call_operand.vmem [shape: f32[1,128], index: 4, kind: input, shape index: {}]
  %s5 = inlined_call_operand.hbm [shape: f32[128,128], index: 5, kind: input, shape index: {}]
  %s6 = inlined_call_operand.vmem [shape: f32[1,128], index: 6, kind: input, shape index: {}]
  %s7 = inlined_call_operand.hbm [shape: f32[128,128], index: 7, kind: input, shape index: {}]
  %s8 = inlined_call_operand.vmem [shape: f32[1,128], index: 8, kind: input, shape index: {}]
  %s9 = inlined_call_operand.hbm [shape: f32[128,128], index: 9, kind: input, shape index: {}]
  %s10 = inlined_call_operand.vmem [shape: f32[1,128], index: 10, kind: input, shape index: {}]
  %s11 = inlined_call_operand.hbm [shape: f32[128,128], index: 11, kind: input, shape index: {}]
  %s12 = inlined_call_operand.vmem [shape: f32[1,128], index: 12, kind: input, shape index: {}]
  %s13 = inlined_call_operand.hbm [shape: f32[208,128], index: 13, kind: output, shape index: {}]
  %s14 = sld [smem:[#allocation0]]
  $region113: #{tpu_custom_call.1} parent=0
    _
  %s16 = ssub.s32 1, %s14
  %s17 = scalar_select 0, %s16, %s14
  $region1: #{tpu_custom_call.1} parent=0
    #allocation2 [shape = 'u8[106496]{0}', space=vmem, size = 0x1a000, scoped, tag = 'input window, operand 0']
    #allocation3 [shape = 's32[2]{0}', space=sflag, size = 0x8, scoped, tag = 'scoped memory for tpu_custom_call.1']
    #allocation4 [shape = 's32[2]{0}', space=sflag, size = 0x8, scoped, tag = 'scoped memory for tpu_custom_call.1']
    #allocation5 [shape = 'u8[65536]{0}', space=vmem, size = 0x10000, scoped, tag = 'input window, operand 1, single buffered']
    #allocation6 [shape = 's32[1]{0}', space=sflag, size = 0x4, scoped, tag = 'scoped memory for tpu_custom_call.1']
    #allocation7 [shape = 'u8[65536]{0}', space=vmem, size = 0x10000, scoped, tag = 'input window, operand 3, single buffered']
    #allocation8 [shape = 'u8[65536]{0}', space=vmem, size = 0x10000, scoped, tag = 'input window, operand 5, single buffered']
    #allocation9 [shape = 's32[1]{0}', space=sflag, size = 0x4, scoped, tag = 'scoped memory for tpu_custom_call.1']
    #allocation10 [shape = 'u8[65536]{0}', space=vmem, size = 0x10000, scoped, tag = 'input window, operand 7, single buffered']
    #allocation11 [shape = 'u8[65536]{0}', space=vmem, size = 0x10000, scoped, tag = 'input window, operand 9, single buffered']
    #allocation12 [shape = 's32[1]{0}', space=sflag, size = 0x4, scoped, tag = 'scoped memory for tpu_custom_call.1']
    #allocation13 [shape = 'u8[65536]{0}', space=vmem, size = 0x10000, scoped, tag = 'input window, operand 11, single buffered']
    #allocation14 [shape = 'u8[106496]{0}', space=vmem, size = 0x1a000, scoped, tag = 'output window, operand 0']
    %18 = vsyncpa [#allocation3], 0
    %s19 = scalar_lea.sflag [#allocation3], 1
    %20 = vsyncpa %s19, 0
    %21 = vsyncpa [#allocation6], 0
    %22 = vsyncpa [#allocation9], 0
    %23 = vsyncpa [#allocation12], 0
    %24 = vsyncpa [#allocation4], 0
    %s25 = scalar_lea.sflag [#allocation4], 1
    %26 = vsyncpa %s25, 0
    loop: start=0, step=1, limit=4
    $region2: #{tpu_custom_call.1} parent=1 // loop_pre_header
      _
    $region3: #{tpu_custom_call.1} parent=1 // loop_header
      %s28 = sphi 0, %s32
      %p29 = scmp.ge.s32.totalorder %s28, 4
      %s38 = sphi 0, %s40
      %s41 = sphi 0, %s38
      %s42 = sphi 0, %s41
      %s58 = sphi 0, %s42
      %s62 = sphi 0, %s62
      %s64 = sphi 0, %s62
      %s65 = sphi 0, %s64
      %s79 = sphi 0, %s65
      %s83 = sphi 0, %s83
      %s85 = sphi 0, %s83
      %s86 = sphi 0, %s85
      %s100 = sphi 0, %s86
      %s104 = sphi 0, %s104
      %s106 = sphi 0, %s104
      %s107 = sphi 0, %s106
      %s121 = sphi 0, %s107
      %s125 = sphi 0, %s125
      %s127 = sphi 0, %s125
      %s128 = sphi 0, %s127
      %s142 = sphi 0, %s128
      %s146 = sphi 0, %s146
      %s148 = sphi 0, %s146
      %s149 = sphi 0, %s148
      %s163 = sphi 0, %s149
      %s167 = sphi 0, %s167
      %s169 = sphi 0, %s167
      %s170 = sphi 0, %s169
      %s184 = sphi 0, %s170
      %s188 = sphi 0, %s188
      %s190 = sphi 0, %s188
      %s191 = sphi 0, %s190
      %s205 = sphi 0, %s191
      %s209 = sphi 0, %s209
      %s211 = sphi 0, %s209
      %s212 = sphi 0, %s211
      %s226 = sphi 0, %s212
      %s230 = sphi 0, %s230
      %s232 = sphi 0, %s230
      %s233 = sphi 0, %s232
      %s247 = sphi 0, %s233
      %s251 = sphi 0, %s251
      %s253 = sphi 0, %s251
      %s254 = sphi 0, %s253
      %s268 = sphi 0, %s254
      %s272 = sphi 0, %s272
      %s274 = sphi 0, %s272
      %s275 = sphi 0, %s274
      %s289 = sphi 0, %s275
      %s293 = sphi 0, %s293
      %s295 = sphi 0, %s293
      %s296 = sphi 0, %s295
      %s310 = sphi 0, %s296
      %s316 = sphi 0, %s318
      %s319 = sphi 0, %s316
      %s320 = sphi 0, %s319
      %s336 = sphi 0, %s320
    $region4: #{tpu_custom_call.1} parent=1 // loop_header_branch
      %31 = sbr.rel (%p29) target = $region8
    $region5: #{tpu_custom_call.1} parent=1 // loop_body
      %s33 = ssub.s32 %s28, 1
      %s34 = ssub.s32 %s28, 2
      %s35 = sadd.s32 %s28, 1
      %s36 = ssub.s32 %s28, %s35
      %p37 = scmp.eq.s32.totalorder %s36, 0
      %s39 = sadd.s32 %s38, 1
      %s40 = scalar_select %p37, %s38, %s39
      %p43 = pneg %p37
      %p44 = scmp.eq.s32.totalorder %s28, 1
      %p45 = por %p43, %p44
      %p46 = scmp.ne.s32.totalorder %s38, %s41
      %p47 = scmp.eq.s32.totalorder %s28, 0
      %p48 = por %p46, %p47
      %p49 = scmp.ne.s32.totalorder %s38, %s41
      %p50 = scmp.eq.s32.totalorder %s33, 1
      %p51 = por %p49, %p50
      %p52 = scmp.ne.s32.totalorder %s41, %s42
      %p53 = scmp.eq.s32.totalorder %s33, 0
      %p54 = por %p52, %p53
      %p55 = scmp.ne.s32.totalorder %s41, %s42
      %p56 = scmp.eq.s32.totalorder %s34, 1
      %p57 = por %p55, %p56
      %p59 = scmp.ne.s32.totalorder %s42, %s58
      %p60 = scmp.eq.s32.totalorder %s34, 0
      %p61 = por %p59, %p60
      %s63 = sadd.s32 %s62, 1
      %p66 = scmp.eq.s32.totalorder %s28, 1
      %p67 = scmp.ne.s32.totalorder %s62, %s64
      %p68 = scmp.eq.s32.totalorder %s28, 0
      %p69 = por %p67, %p68
      %p70 = scmp.ne.s32.totalorder %s62, %s64
      %p71 = scmp.eq.s32.totalorder %s33, 1
      %p72 = por %p70, %p71
      %p73 = scmp.ne.s32.totalorder %s64, %s65
      %p74 = scmp.eq.s32.totalorder %s33, 0
      %p75 = por %p73, %p74
      %p76 = scmp.ne.s32.totalorder %s64, %s65
      %p77 = scmp.eq.s32.totalorder %s34, 1
      %p78 = por %p76, %p77
      %p80 = scmp.ne.s32.totalorder %s65, %s79
      %p81 = scmp.eq.s32.totalorder %s34, 0
      %p82 = por %p80, %p81
      %s84 = sadd.s32 %s83, 1
      %p87 = scmp.eq.s32.totalorder %s28, 1
      %p88 = scmp.ne.s32.totalorder %s83, %s85
      %p89 = scmp.eq.s32.totalorder %s28, 0
      %p90 = por %p88, %p89
      %p91 = scmp.ne.s32.totalorder %s83, %s85
      %p92 = scmp.eq.s32.totalorder %s33, 1
      %p93 = por %p91, %p92
      %p94 = scmp.ne.s32.totalorder %s85, %s86
      %p95 = scmp.eq.s32.totalorder %s33, 0
      %p96 = por %p94, %p95
      %p97 = scmp.ne.s32.totalorder %s85, %s86
      %p98 = scmp.eq.s32.totalorder %s34, 1
      %p99 = por %p97, %p98
      %p101 = scmp.ne.s32.totalorder %s86, %s100
      %p102 = scmp.eq.s32.totalorder %s34, 0
      %p103 = por %p101, %p102
      %s105 = sadd.s32 %s104, 1
      %p108 = scmp.eq.s32.totalorder %s28, 1
      %p109 = scmp.ne.s32.totalorder %s104, %s106
      %p110 = scmp.eq.s32.totalorder %s28, 0
      %p111 = por %p109, %p110
      %p112 = scmp.ne.s32.totalorder %s104, %s106
      %p113 = scmp.eq.s32.totalorder %s33, 1
      %p114 = por %p112, %p113
      %p115 = scmp.ne.s32.totalorder %s106, %s107
      %p116 = scmp.eq.s32.totalorder %s33, 0
      %p117 = por %p115, %p116
      %p118 = scmp.ne.s32.totalorder %s106, %s107
      %p119 = scmp.eq.s32.totalorder %s34, 1
      %p120 = por %p118, %p119
      %p122 = scmp.ne.s32.totalorder %s107, %s121
      %p123 = scmp.eq.s32.totalorder %s34, 0
      %p124 = por %p122, %p123
      %s126 = sadd.s32 %s125, 1
      %p129 = scmp.eq.s32.totalorder %s28, 1
      %p130 = scmp.ne.s32.totalorder %s125, %s127
      %p131 = scmp.eq.s32.totalorder %s28, 0
      %p132 = por %p130, %p131
      %p133 = scmp.ne.s32.totalorder %s125, %s127
      %p134 = scmp.eq.s32.totalorder %s33, 1
      %p135 = por %p133, %p134
      %p136 = scmp.ne.s32.totalorder %s127, %s128
      %p137 = scmp.eq.s32.totalorder %s33, 0
      %p138 = por %p136, %p137
      %p139 = scmp.ne.s32.totalorder %s127, %s128
      %p140 = scmp.eq.s32.totalorder %s34, 1
      %p141 = por %p139, %p140
      %p143 = scmp.ne.s32.totalorder %s128, %s142
      %p144 = scmp.eq.s32.totalorder %s34, 0
      %p145 = por %p143, %p144
      %s147 = sadd.s32 %s146, 1
      %p150 = scmp.eq.s32.totalorder %s28, 1
      %p151 = scmp.ne.s32.totalorder %s146, %s148
      %p152 = scmp.eq.s32.totalorder %s28, 0
      %p153 = por %p151, %p152
      %p154 = scmp.ne.s32.totalorder %s146, %s148
      %p155 = scmp.eq.s32.totalorder %s33, 1
      %p156 = por %p154, %p155
      %p157 = scmp.ne.s32.totalorder %s148, %s149
      %p158 = scmp.eq.s32.totalorder %s33, 0
      %p159 = por %p157, %p158
      %p160 = scmp.ne.s32.totalorder %s148, %s149
      %p161 = scmp.eq.s32.totalorder %s34, 1
      %p162 = por %p160, %p161
      %p164 = scmp.ne.s32.totalorder %s149, %s163
      %p165 = scmp.eq.s32.totalorder %s34, 0
      %p166 = por %p164, %p165
      %s168 = sadd.s32 %s167, 1
      %p171 = scmp.eq.s32.totalorder %s28, 1
      %p172 = scmp.ne.s32.totalorder %s167, %s169
      %p173 = scmp.eq.s32.totalorder %s28, 0
      %p174 = por %p172, %p173
      %p175 = scmp.ne.s32.totalorder %s167, %s169
      %p176 = scmp.eq.s32.totalorder %s33, 1
      %p177 = por %p175, %p176
      %p178 = scmp.ne.s32.totalorder %s169, %s170
      %p179 = scmp.eq.s32.totalorder %s33, 0
      %p180 = por %p178, %p179
      %p181 = scmp.ne.s32.totalorder %s169, %s170
      %p182 = scmp.eq.s32.totalorder %s34, 1
      %p183 = por %p181, %p182
      %p185 = scmp.ne.s32.totalorder %s170, %s184
      %p186 = scmp.eq.s32.totalorder %s34, 0
      %p187 = por %p185, %p186
      %s189 = sadd.s32 %s188, 1
      %p192 = scmp.eq.s32.totalorder %s28, 1
      %p193 = scmp.ne.s32.totalorder %s188, %s190
      %p194 = scmp.eq.s32.totalorder %s28, 0
      %p195 = por %p193, %p194
      %p196 = scmp.ne.s32.totalorder %s188, %s190
      %p197 = scmp.eq.s32.totalorder %s33, 1
      %p198 = por %p196, %p197
      %p199 = scmp.ne.s32.totalorder %s190, %s191
      %p200 = scmp.eq.s32.totalorder %s33, 0
      %p201 = por %p199, %p200
      %p202 = scmp.ne.s32.totalorder %s190, %s191
      %p203 = scmp.eq.s32.totalorder %s34, 1
      %p204 = por %p202, %p203
      %p206 = scmp.ne.s32.totalorder %s191, %s205
      %p207 = scmp.eq.s32.totalorder %s34, 0
      %p208 = por %p206, %p207
      %s210 = sadd.s32 %s209, 1
      %p213 = scmp.eq.s32.totalorder %s28, 1
      %p214 = scmp.ne.s32.totalorder %s209, %s211
      %p215 = scmp.eq.s32.totalorder %s28, 0
      %p216 = por %p214, %p215
      %p217 = scmp.ne.s32.totalorder %s209, %s211
      %p218 = scmp.eq.s32.totalorder %s33, 1
      %p219 = por %p217, %p218
      %p220 = scmp.ne.s32.totalorder %s211, %s212
      %p221 = scmp.eq.s32.totalorder %s33, 0
      %p222 = por %p220, %p221
      %p223 = scmp.ne.s32.totalorder %s211, %s212
      %p224 = scmp.eq.s32.totalorder %s34, 1
      %p225 = por %p223, %p224
      %p227 = scmp.ne.s32.totalorder %s212, %s226
      %p228 = scmp.eq.s32.totalorder %s34, 0
      %p229 = por %p227, %p228
      %s231 = sadd.s32 %s230, 1
      %p234 = scmp.eq.s32.totalorder %s28, 1
      %p235 = scmp.ne.s32.totalorder %s230, %s232
      %p236 = scmp.eq.s32.totalorder %s28, 0
      %p237 = por %p235, %p236
      %p238 = scmp.ne.s32.totalorder %s230, %s232
      %p239 = scmp.eq.s32.totalorder %s33, 1
      %p240 = por %p238, %p239
      %p241 = scmp.ne.s32.totalorder %s232, %s233
      %p242 = scmp.eq.s32.totalorder %s33, 0
      %p243 = por %p241, %p242
      %p244 = scmp.ne.s32.totalorder %s232, %s233
      %p245 = scmp.eq.s32.totalorder %s34, 1
      %p246 = por %p244, %p245
      %p248 = scmp.ne.s32.totalorder %s233, %s247
      %p249 = scmp.eq.s32.totalorder %s34, 0
      %p250 = por %p248, %p249
      %s252 = sadd.s32 %s251, 1
      %p255 = scmp.eq.s32.totalorder %s28, 1
      %p256 = scmp.ne.s32.totalorder %s251, %s253
      %p257 = scmp.eq.s32.totalorder %s28, 0
      %p258 = por %p256, %p257
      %p259 = scmp.ne.s32.totalorder %s251, %s253
      %p260 = scmp.eq.s32.totalorder %s33, 1
      %p261 = por %p259, %p260
      %p262 = scmp.ne.s32.totalorder %s253, %s254
      %p263 = scmp.eq.s32.totalorder %s33, 0
      %p264 = por %p262, %p263
      %p265 = scmp.ne.s32.totalorder %s253, %s254
      %p266 = scmp.eq.s32.totalorder %s34, 1
      %p267 = por %p265, %p266
      %p269 = scmp.ne.s32.totalorder %s254, %s268
      %p270 = scmp.eq.s32.totalorder %s34, 0
      %p271 = por %p269, %p270
      %s273 = sadd.s32 %s272, 1
      %p276 = scmp.eq.s32.totalorder %s28, 1
      %p277 = scmp.ne.s32.totalorder %s272, %s274
      %p278 = scmp.eq.s32.totalorder %s28, 0
      %p279 = por %p277, %p278
      %p280 = scmp.ne.s32.totalorder %s272, %s274
      %p281 = scmp.eq.s32.totalorder %s33, 1
      %p282 = por %p280, %p281
      %p283 = scmp.ne.s32.totalorder %s274, %s275
      %p284 = scmp.eq.s32.totalorder %s33, 0
      %p285 = por %p283, %p284
      %p286 = scmp.ne.s32.totalorder %s274, %s275
      %p287 = scmp.eq.s32.totalorder %s34, 1
      %p288 = por %p286, %p287
      %p290 = scmp.ne.s32.totalorder %s275, %s289
      %p291 = scmp.eq.s32.totalorder %s34, 0
      %p292 = por %p290, %p291
      %s294 = sadd.s32 %s293, 1
      %p297 = scmp.eq.s32.totalorder %s28, 1
      %p298 = scmp.ne.s32.totalorder %s293, %s295
      %p299 = scmp.eq.s32.totalorder %s28, 0
      %p300 = por %p298, %p299
      %p301 = scmp.ne.s32.totalorder %s293, %s295
      %p302 = scmp.eq.s32.totalorder %s33, 1
      %p303 = por %p301, %p302
      %p304 = scmp.ne.s32.totalorder %s295, %s296
      %p305 = scmp.eq.s32.totalorder %s33, 0
      %p306 = por %p304, %p305
      %p307 = scmp.ne.s32.totalorder %s295, %s296
      %p308 = scmp.eq.s32.totalorder %s34, 1
      %p309 = por %p307, %p308
      %p311 = scmp.ne.s32.totalorder %s296, %s310
      %p312 = scmp.eq.s32.totalorder %s34, 0
      %p313 = por %p311, %p312
      %s314 = ssub.s32 %s28, %s35
      %p315 = scmp.eq.s32.totalorder %s314, 0
      %s317 = sadd.s32 %s316, 1
      %s318 = scalar_select %p315, %s316, %s317
      %p321 = pneg %p315
      %p322 = scmp.eq.s32.totalorder %s28, 1
      %p323 = por %p321, %p322
      %p324 = scmp.ne.s32.totalorder %s316, %s319
      %p325 = scmp.eq.s32.totalorder %s28, 0
      %p326 = por %p324, %p325
      %p327 = scmp.ne.s32.totalorder %s316, %s319
      %p328 = scmp.eq.s32.totalorder %s33, 1
      %p329 = por %p327, %p328
      %p330 = scmp.ne.s32.totalorder %s319, %s320
      %p331 = scmp.eq.s32.totalorder %s33, 0
      %p332 = por %p330, %p331
      %p333 = scmp.ne.s32.totalorder %s319, %s320
      %p334 = scmp.eq.s32.totalorder %s34, 1
      %p335 = por %p333, %p334
      %p337 = scmp.ne.s32.totalorder %s320, %s336
      %p338 = scmp.eq.s32.totalorder %s34, 0
      %p339 = por %p337, %p338
      %p340 = scmp.le.s32.totalorder 1, %s28
      %p341 = scmp.lt.s32.totalorder %s28, 3
      %p342 = pnand %p340, %p341
      %p343 = pneg %p342
      // Predicated region
      $region9: #{tpu_custom_call.1} parent=5 // pred_check
        _
      $region10: #{tpu_custom_call.1} parent=5 // pred_check_branch
        %345 = sbr.rel (%p342) target = $region12
      $region11: #{tpu_custom_call.1} parent=5 // pred_region
        %s346 = ssub.s32 %s28, 1
        // Predicated region
        $region13: #{tpu_custom_call.1} parent=11 // pred_check
          %p347 = pneg %p75
        $region14: #{tpu_custom_call.1} parent=11 // pred_check_branch
          %349 = sbr.rel (%p347) target = $region16
        $region15: #{tpu_custom_call.1} parent=11 // pred_region
          %351 = vsyncadd [#allocation6], 0
          %s352 = sshll.u32 %s1, 4
          %s353 = int_to_ptr.hbm [resolvable:$true] %s352
          %s354 = sshll.u32 [#allocation5], 4
          %s355 = int_to_ptr.vmem [resolvable:$true] %s354
          %360 = dma.hbm_to_vmem [thread:$0]  %s353, 2048, %s355, [#allocation6], 128, 128, 8
        $region16: #{tpu_custom_call.1} parent=11 // pred_fallthru
          _
        // Predicated region
        $region17: #{tpu_custom_call.1} parent=11 // pred_check
          %p361 = pneg %p96
        $region18: #{tpu_custom_call.1} parent=11 // pred_check_branch
          %363 = sbr.rel (%p361) target = $region20
        $region19: #{tpu_custom_call.1} parent=11 // pred_region
          _
        $region20: #{tpu_custom_call.1} parent=11 // pred_fallthru
          _
        // Predicated region
        $region21: #{tpu_custom_call.1} parent=11 // pred_check
          %p364 = pneg %p117
        $region22: #{tpu_custom_call.1} parent=11 // pred_check_branch
          %366 = sbr.rel (%p364) target = $region24
        $region23: #{tpu_custom_call.1} parent=11 // pred_region
          %368 = vsyncadd [#allocation6], 0
          %s369 = sshll.u32 %s3, 4
          %s370 = int_to_ptr.hbm [resolvable:$true] %s369
          %s371 = sshll.u32 [#allocation7], 4
          %s372 = int_to_ptr.vmem [resolvable:$true] %s371
          %377 = dma.hbm_to_vmem [thread:$0]  %s370, 2048, %s372, [#allocation6], 128, 128, 8
        $region24: #{tpu_custom_call.1} parent=11 // pred_fallthru
          _
        // Predicated region
        $region25: #{tpu_custom_call.1} parent=11 // pred_check
          %p378 = pneg %p138
        $region26: #{tpu_custom_call.1} parent=11 // pred_check_branch
          %380 = sbr.rel (%p378) target = $region28
        $region27: #{tpu_custom_call.1} parent=11 // pred_region
          _
        $region28: #{tpu_custom_call.1} parent=11 // pred_fallthru
          _
        // Predicated region
        $region29: #{tpu_custom_call.1} parent=11 // pred_check
          %p381 = pneg %p159
        $region30: #{tpu_custom_call.1} parent=11 // pred_check_branch
          %383 = sbr.rel (%p381) target = $region32
        $region31: #{tpu_custom_call.1} parent=11 // pred_region
          %385 = vsyncadd [#allocation9], 0
          %s386 = sshll.u32 %s5, 4
          %s387 = int_to_ptr.hbm [resolvable:$true] %s386
          %s388 = sshll.u32 [#allocation8], 4
          %s389 = int_to_ptr.vmem [resolvable:$true] %s388
          %394 = dma.hbm_to_vmem [thread:$0]  %s387, 2048, %s389, [#allocation9], 128, 128, 8
        $region32: #{tpu_custom_call.1} parent=11 // pred_fallthru
          _
        // Predicated region
        $region33: #{tpu_custom_call.1} parent=11 // pred_check
          %p395 = pneg %p180
        $region34: #{tpu_custom_call.1} parent=11 // pred_check_branch
          %397 = sbr.rel (%p395) target = $region36
        $region35: #{tpu_custom_call.1} parent=11 // pred_region
          _
        $region36: #{tpu_custom_call.1} parent=11 // pred_fallthru
          _
        // Predicated region
        $region37: #{tpu_custom_call.1} parent=11 // pred_check
          %p398 = pneg %p201
        $region38: #{tpu_custom_call.1} parent=11 // pred_check_branch
          %400 = sbr.rel (%p398) target = $region40
        $region39: #{tpu_custom_call.1} parent=11 // pred_region
          %402 = vsyncadd [#allocation9], 0
          %s403 = sshll.u32 %s7, 4
          %s404 = int_to_ptr.hbm [resolvable:$true] %s403
          %s405 = sshll.u32 [#allocation10], 4
          %s406 = int_to_ptr.vmem [resolvable:$true] %s405
          %411 = dma.hbm_to_vmem [thread:$0]  %s404, 2048, %s406, [#allocation9], 128, 128, 8
        $region40: #{tpu_custom_call.1} parent=11 // pred_fallthru
          _
        // Predicated region
        $region41: #{tpu_custom_call.1} parent=11 // pred_check
          %p412 = pneg %p222
        $region42: #{tpu_custom_call.1} parent=11 // pred_check_branch
          %414 = sbr.rel (%p412) target = $region44
        $region43: #{tpu_custom_call.1} parent=11 // pred_region
          _
        $region44: #{tpu_custom_call.1} parent=11 // pred_fallthru
          _
        // Predicated region
        $region45: #{tpu_custom_call.1} parent=11 // pred_check
          %p415 = pneg %p243
        $region46: #{tpu_custom_call.1} parent=11 // pred_check_branch
          %417 = sbr.rel (%p415) target = $region48
        $region47: #{tpu_custom_call.1} parent=11 // pred_region
          %419 = vsyncadd [#allocation12], 0
          %s420 = sshll.u32 %s9, 4
          %s421 = int_to_ptr.hbm [resolvable:$true] %s420
          %s422 = sshll.u32 [#allocation11], 4
          %s423 = int_to_ptr.vmem [resolvable:$true] %s422
          %428 = dma.hbm_to_vmem [thread:$0]  %s421, 2048, %s423, [#allocation12], 128, 128, 8
        $region48: #{tpu_custom_call.1} parent=11 // pred_fallthru
          _
        // Predicated region
        $region49: #{tpu_custom_call.1} parent=11 // pred_check
          %p429 = pneg %p264
        $region50: #{tpu_custom_call.1} parent=11 // pred_check_branch
          %431 = sbr.rel (%p429) target = $region52
        $region51: #{tpu_custom_call.1} parent=11 // pred_region
          _
        $region52: #{tpu_custom_call.1} parent=11 // pred_fallthru
          _
        // Predicated region
        $region53: #{tpu_custom_call.1} parent=11 // pred_check
          %p432 = pneg %p285
        $region54: #{tpu_custom_call.1} parent=11 // pred_check_branch
          %434 = sbr.rel (%p432) target = $region56
        $region55: #{tpu_custom_call.1} parent=11 // pred_region
          %436 = vsyncadd [#allocation12], 0
          %s437 = sshll.u32 %s11, 4
          %s438 = int_to_ptr.hbm [resolvable:$true] %s437
          %s439 = sshll.u32 [#allocation13], 4
          %s440 = int_to_ptr.vmem [resolvable:$true] %s439
          %445 = dma.hbm_to_vmem [thread:$0]  %s438, 2048, %s440, [#allocation12], 128, 128, 8
        $region56: #{tpu_custom_call.1} parent=11 // pred_fallthru
          _
        // Predicated region
        $region57: #{tpu_custom_call.1} parent=11 // pred_check
          %p446 = pneg %p306
        $region58: #{tpu_custom_call.1} parent=11 // pred_check_branch
          %448 = sbr.rel (%p446) target = $region60
        $region59: #{tpu_custom_call.1} parent=11 // pred_region
          _
        $region60: #{tpu_custom_call.1} parent=11 // pred_fallthru
          _
      $region12: #{tpu_custom_call.1} parent=5 // pred_fallthru
        _
      %p449 = scmp.lt.s32.totalorder %s28, 2
      // Predicated region
      $region61: #{tpu_custom_call.1} parent=5 // pred_check
        %p450 = pneg %p449
      $region62: #{tpu_custom_call.1} parent=5 // pred_check_branch
        %452 = sbr.rel (%p450) target = $region64
      $region63: #{tpu_custom_call.1} parent=5 // pred_region
        // Predicated region
        $region65: #{tpu_custom_call.1} parent=63 // pred_check
          %p453 = pneg %p48
        $region66: #{tpu_custom_call.1} parent=63 // pred_check_branch
          %455 = sbr.rel (%p453) target = $region68
        $region67: #{tpu_custom_call.1} parent=63 // pred_region
          %s456 = sand.u32 %s38, 1
          %s457 = scalar_lea.sflag [#allocation3], %s456
          %s458 = sand.u32 %s38, 1
          %s459 = smul.addr %s458, 104
          %s460 = scalar_lea.vmem [#allocation2], %s459
          %s461 = smul.u32 13, %s28
          %463 = vsyncadd %s457, 0
          %s464 = smul.addr %s461, 8
          %s465 = scalar_lea.hbm %s0, %s464
          %s466 = sshll.u32 %s465, 4
          %s467 = int_to_ptr.hbm [resolvable:$true] %s466
          %s468 = sshll.u32 %s460, 4
          %s469 = int_to_ptr.vmem [resolvable:$true] %s468
          %474 = dma.hbm_to_vmem [thread:$0]  %s467, 1664, %s469, %s457, 128, 128, 8
        $region68: #{tpu_custom_call.1} parent=63 // pred_fallthru
          _
      $region64: #{tpu_custom_call.1} parent=5 // pred_fallthru
        _
      %p475 = scmp.le.s32.totalorder 1, %s28
      %p476 = scmp.lt.s32.totalorder %s28, 3
      %p477 = pnand %p475, %p476
      %p478 = pneg %p477
      // Predicated region
      $region69: #{tpu_custom_call.1} parent=5 // pred_check
        _
      $region70: #{tpu_custom_call.1} parent=5 // pred_check_branch
        %480 = sbr.rel (%p477) target = $region72
      $region71: #{tpu_custom_call.1} parent=5 // pred_region
        %s481 = ssub.s32 %s28, 1
        %s482 = sand.u32 %s41, 1
        %s483 = scalar_lea.sflag [#allocation3], %s482
        %s484 = sand.u32 %s41, 1
        %s485 = smul.addr %s484, 104
        %s486 = scalar_lea.vmem [#allocation2], %s485
        // Predicated region
        $region73: #{tpu_custom_call.1} parent=71 // pred_check
          %p487 = pneg %p54
        $region74: #{tpu_custom_call.1} parent=71 // pred_check_branch
          %489 = sbr.rel (%p487) target = $region76
        $region75: #{tpu_custom_call.1} parent=71 // pred_region
          %491 = dma.done %s483, 1664
        $region76: #{tpu_custom_call.1} parent=71 // pred_fallthru
          _
        // Predicated region
        $region77: #{tpu_custom_call.1} parent=71 // pred_check
          %p492 = pneg %p75
        $region78: #{tpu_custom_call.1} parent=71 // pred_check_branch
          %494 = sbr.rel (%p492) target = $region80
        $region79: #{tpu_custom_call.1} parent=71 // pred_region
          %496 = dma.done [#allocation6], 2048
        $region80: #{tpu_custom_call.1} parent=71 // pred_fallthru
          _
        // Predicated region
        $region81: #{tpu_custom_call.1} parent=71 // pred_check
          %p497 = pneg %p117
        $region82: #{tpu_custom_call.1} parent=71 // pred_check_branch
          %499 = sbr.rel (%p497) target = $region84
        $region83: #{tpu_custom_call.1} parent=71 // pred_region
          %501 = dma.done [#allocation6], 2048
        $region84: #{tpu_custom_call.1} parent=71 // pred_fallthru
          _
        // Predicated region
        $region85: #{tpu_custom_call.1} parent=71 // pred_check
          %p502 = pneg %p159
        $region86: #{tpu_custom_call.1} parent=71 // pred_check_branch
          %504 = sbr.rel (%p502) target = $region88
        $region87: #{tpu_custom_call.1} parent=71 // pred_region
          %506 = dma.done [#allocation9], 2048
        $region88: #{tpu_custom_call.1} parent=71 // pred_fallthru
          _
        // Predicated region
        $region89: #{tpu_custom_call.1} parent=71 // pred_check
          %p507 = pneg %p201
        $region90: #{tpu_custom_call.1} parent=71 // pred_check_branch
          %509 = sbr.rel (%p507) target = $region92
        $region91: #{tpu_custom_call.1} parent=71 // pred_region
          %511 = dma.done [#allocation9], 2048
        $region92: #{tpu_custom_call.1} parent=71 // pred_fallthru
          _
        // Predicated region
        $region93: #{tpu_custom_call.1} parent=71 // pred_check
          %p512 = pneg %p243
        $region94: #{tpu_custom_call.1} parent=71 // pred_check_branch
          %514 = sbr.rel (%p512) target = $region96
        $region95: #{tpu_custom_call.1} parent=71 // pred_region
          %516 = dma.done [#allocation12], 2048
        $region96: #{tpu_custom_call.1} parent=71 // pred_fallthru
          _
        // Predicated region
        $region97: #{tpu_custom_call.1} parent=71 // pred_check
          %p517 = pneg %p285
        $region98: #{tpu_custom_call.1} parent=71 // pred_check_branch
          %519 = sbr.rel (%p517) target = $region100
        $region99: #{tpu_custom_call.1} parent=71 // pred_region
          %521 = dma.done [#allocation12], 2048
        $region100: #{tpu_custom_call.1} parent=71 // pred_fallthru
          _
        %s522 = sand.u32 %s41, 1
        %s523 = scalar_lea.sflag [#allocation3], %s522
        %s524 = sand.u32 %s41, 1
        %s525 = smul.addr %s524, 104
        %s526 = scalar_lea.vmem [#allocation2], %s525
        %p527 = pneg %p54
        %p528 = pneg %p51
        %p529 = pneg %p75
        %p530 = pneg %p72
        %p531 = pneg %p96
        %p532 = pneg %p93
        %p533 = pneg %p117
        %p534 = pneg %p114
        %p535 = pneg %p138
        %p536 = pneg %p135
        %p537 = pneg %p159
        %p538 = pneg %p156
        %p539 = pneg %p180
        %p540 = pneg %p177
        %p541 = pneg %p201
        %p542 = pneg %p198
        %p543 = pneg %p222
        %p544 = pneg %p219
        %p545 = pneg %p243
        %p546 = pneg %p240
        %p547 = pneg %p264
        %p548 = pneg %p261
        %p549 = pneg %p285
        %p550 = pneg %p282
        %p551 = pneg %p306
        %p552 = pneg %p303
        %p553 = pneg %p332
        %p554 = pneg %p329
        %s555 = sand.u32 %s319, 1
        %s556 = scalar_lea.sflag [#allocation4], %s555
        %s557 = sand.u32 %s319, 1
        %s558 = smul.addr %s557, 104
        %s559 = scalar_lea.vmem [#allocation14], %s558
        %s560 = smul.u32 13, %s33
        %s561 = smul.u32 13, %s33
        %v562 = vld [vmem:[%s486] sm:$0xff]
        %v563 = vld [vmem:[%s486 + $0x8] sm:$0xff]
        %v564 = vld [vmem:[%s486 + $0x10] sm:$0xff]
        %v565 = vld [vmem:[%s486 + $0x18] sm:$0xff]
        %v566 = vld [vmem:[%s486 + $0x20] sm:$0xff]
        %v567 = vld [vmem:[%s486 + $0x28] sm:$0xff]
        %v568 = vld [vmem:[%s486 + $0x30] sm:$0xff]
        %v569 = vld [vmem:[%s486 + $0x38] sm:$0xff]
        %v570 = vld [vmem:[%s486 + $0x40] sm:$0xff]
        %v571 = vld [vmem:[%s486 + $0x48] sm:$0xff]
        %v572 = vld [vmem:[%s486 + $0x50] sm:$0xff]
        %v573 = vld [vmem:[%s486 + $0x58] sm:$0xff]
        %v574 = vld [vmem:[%s486 + $0x60] sm:$0xff]
        %v575 = vld [vmem:[#allocation5] sm:$0xff]
        %v576 = vld [vmem:[#allocation5 + $0x8] sm:$0xff]
        %v577 = vld [vmem:[#allocation5 + $0x10] sm:$0xff]
        %v578 = vld [vmem:[#allocation5 + $0x18] sm:$0xff]
        %v579 = vld [vmem:[#allocation5 + $0x20] sm:$0xff]
        %v580 = vld [vmem:[#allocation5 + $0x28] sm:$0xff]
        %v581 = vld [vmem:[#allocation5 + $0x30] sm:$0xff]
        %v582 = vld [vmem:[#allocation5 + $0x38] sm:$0xff]
        %v583 = vld [vmem:[#allocation5 + $0x40] sm:$0xff]
        %v584 = vld [vmem:[#allocation5 + $0x48] sm:$0xff]
        %v585 = vld [vmem:[#allocation5 + $0x50] sm:$0xff]
        %v586 = vld [vmem:[#allocation5 + $0x58] sm:$0xff]
        %v587 = vld [vmem:[#allocation5 + $0x60] sm:$0xff]
        %v588 = vld [vmem:[#allocation5 + $0x68] sm:$0xff]
        %v589 = vld [vmem:[#allocation5 + $0x70] sm:$0xff]
        %v590 = vld [vmem:[#allocation5 + $0x78] sm:$0xff]
        %v591 = vld [vmem:[%s2] sm:$0x1]
        %v593 = vperm.slane %v591, 0
        %595 = vmatpush.msra.mxu0 %v590
        %596 = vmatpush.msra.mxu0 %v589
        %597 = vmatpush.msra.mxu0 %v588
        %598 = vmatpush.msra.mxu0 %v587
        %599 = vmatpush.msra.mxu0 %v586
        %600 = vmatpush.msra.mxu0 %v585
        %601 = vmatpush.msra.mxu0 %v584
        %602 = vmatpush.msra.mxu0 %v583
        %603 = vmatpush.msra.mxu0 %v582
        %604 = vmatpush.msra.mxu0 %v581
        %605 = vmatpush.msra.mxu0 %v580
        %606 = vmatpush.msra.mxu0 %v579
        %607 = vmatpush.msra.mxu0 %v578
        %608 = vmatpush.msra.mxu0 %v577
        %609 = vmatpush.msra.mxu0 %v576
        %610 = vmatpush.msra.mxu0 %v575
        %611 = vmatmul.f32.gmra.mxu0 %v562
        %v612 = vpop.f32.mrf.mxu0
        %v613 = vadd.f32 %v593, %v612
        %614 = vmatmul.f32.gmra.mxu0 %v563
        %v615 = vpop.f32.mrf.mxu0
        %v616 = vadd.f32 %v593, %v615
        %617 = vmatmul.f32.gmra.mxu0 %v564
        %v618 = vpop.f32.mrf.mxu0
        %v619 = vadd.f32 %v593, %v618
        %620 = vmatmul.f32.gmra.mxu0 %v565
        %v621 = vpop.f32.mrf.mxu0
        %v622 = vadd.f32 %v593, %v621
        %623 = vmatmul.f32.gmra.mxu0 %v566
        %v624 = vpop.f32.mrf.mxu0
        %v625 = vadd.f32 %v593, %v624
        %626 = vmatmul.f32.gmra.mxu0 %v567
        %v627 = vpop.f32.mrf.mxu0
        %v628 = vadd.f32 %v593, %v627
        %629 = vmatmul.f32.gmra.mxu0 %v568
        %v630 = vpop.f32.mrf.mxu0
        %v631 = vadd.f32 %v593, %v630
        %632 = vmatmul.f32.gmra.mxu0 %v569
        %v633 = vpop.f32.mrf.mxu0
        %v634 = vadd.f32 %v593, %v633
        %635 = vmatmul.f32.gmra.mxu0 %v570
        %v636 = vpop.f32.mrf.mxu0
        %v637 = vadd.f32 %v593, %v636
        %638 = vmatmul.f32.gmra.mxu0 %v571
        %v639 = vpop.f32.mrf.mxu0
        %v640 = vadd.f32 %v593, %v639
        %641 = vmatmul.f32.gmra.mxu0 %v572
        %v642 = vpop.f32.mrf.mxu0
        %v643 = vadd.f32 %v593, %v642
        %644 = vmatmul.f32.gmra.mxu0 %v573
        %v645 = vpop.f32.mrf.mxu0
        %v646 = vadd.f32 %v593, %v645
        %647 = vmatmul.f32.gmra.mxu0 %v574
        %v648 = vpop.f32.mrf.mxu0
        %v649 = vadd.f32 %v593, %v648
        %650 = vdwg.mxu0
        %v651 = vmax.f32 %v613, 0.0
        %v652 = vmax.f32 %v616, 0.0
        %v653 = vmax.f32 %v619, 0.0
        %v654 = vmax.f32 %v622, 0.0
        %v655 = vmax.f32 %v625, 0.0
        %v656 = vmax.f32 %v628, 0.0
        %v657 = vmax.f32 %v631, 0.0
        %v658 = vmax.f32 %v634, 0.0
        %v659 = vmax.f32 %v637, 0.0
        %v660 = vmax.f32 %v640, 0.0
        %v661 = vmax.f32 %v643, 0.0
        %v662 = vmax.f32 %v646, 0.0
        %v663 = vmax.f32 %v649, 0.0
        %v664 = vld [vmem:[#allocation7] sm:$0xff]
        %v665 = vld [vmem:[#allocation7 + $0x8] sm:$0xff]
        %v666 = vld [vmem:[#allocation7 + $0x10] sm:$0xff]
        %v667 = vld [vmem:[#allocation7 + $0x18] sm:$0xff]
        %v668 = vld [vmem:[#allocation7 + $0x20] sm:$0xff]
        %v669 = vld [vmem:[#allocation7 + $0x28] sm:$0xff]
        %v670 = vld [vmem:[#allocation7 + $0x30] sm:$0xff]
        %v671 = vld [vmem:[#allocation7 + $0x38] sm:$0xff]
        %v672 = vld [vmem:[#allocation7 + $0x40] sm:$0xff]
        %v673 = vld [vmem:[#allocation7 + $0x48] sm:$0xff]
        %v674 = vld [vmem:[#allocation7 + $0x50] sm:$0xff]
        %v675 = vld [vmem:[#allocation7 + $0x58] sm:$0xff]
        %v676 = vld [vmem:[#allocation7 + $0x60] sm:$0xff]
        %v677 = vld [vmem:[#allocation7 + $0x68] sm:$0xff]
        %v678 = vld [vmem:[#allocation7 + $0x70] sm:$0xff]
        %v679 = vld [vmem:[#allocation7 + $0x78] sm:$0xff]
        %v680 = vld [vmem:[%s4] sm:$0x1]
        %v682 = vperm.slane %v680, 0
        %684 = vmatpush.msra.mxu0 %v679
        %685 = vmatpush.msra.mxu0 %v678
        %686 = vmatpush.msra.mxu0 %v677
        %687 = vmatpush.msra.mxu0 %v676
        %688 = vmatpush.msra.mxu0 %v675
        %689 = vmatpush.msra.mxu0 %v674
        %690 = vmatpush.msra.mxu0 %v673
        %691 = vmatpush.msra.mxu0 %v672
        %692 = vmatpush.msra.mxu0 %v671
        %693 = vmatpush.msra.mxu0 %v670
        %694 = vmatpush.msra.mxu0 %v669
        %695 = vmatpush.msra.mxu0 %v668
        %696 = vmatpush.msra.mxu0 %v667
        %697 = vmatpush.msra.mxu0 %v666
        %698 = vmatpush.msra.mxu0 %v665
        %699 = vmatpush.msra.mxu0 %v664
        %700 = vmatmul.f32.gmra.mxu0 %v651
        %v701 = vpop.f32.mrf.mxu0
        %v702 = vadd.f32 %v682, %v701
        %703 = vmatmul.f32.gmra.mxu0 %v652
        %v704 = vpop.f32.mrf.mxu0
        %v705 = vadd.f32 %v682, %v704
        %706 = vmatmul.f32.gmra.mxu0 %v653
        %v707 = vpop.f32.mrf.mxu0
        %v708 = vadd.f32 %v682, %v707
        %709 = vmatmul.f32.gmra.mxu0 %v654
        %v710 = vpop.f32.mrf.mxu0
        %v711 = vadd.f32 %v682, %v710
        %712 = vmatmul.f32.gmra.mxu0 %v655
        %v713 = vpop.f32.mrf.mxu0
        %v714 = vadd.f32 %v682, %v713
        %715 = vmatmul.f32.gmra.mxu0 %v656
        %v716 = vpop.f32.mrf.mxu0
        %v717 = vadd.f32 %v682, %v716
        %718 = vmatmul.f32.gmra.mxu0 %v657
        %v719 = vpop.f32.mrf.mxu0
        %v720 = vadd.f32 %v682, %v719
        %721 = vmatmul.f32.gmra.mxu0 %v658
        %v722 = vpop.f32.mrf.mxu0
        %v723 = vadd.f32 %v682, %v722
        %724 = vmatmul.f32.gmra.mxu0 %v659
        %v725 = vpop.f32.mrf.mxu0
        %v726 = vadd.f32 %v682, %v725
        %727 = vmatmul.f32.gmra.mxu0 %v660
        %v728 = vpop.f32.mrf.mxu0
        %v729 = vadd.f32 %v682, %v728
        %730 = vmatmul.f32.gmra.mxu0 %v661
        %v731 = vpop.f32.mrf.mxu0
        %v732 = vadd.f32 %v682, %v731
        %733 = vmatmul.f32.gmra.mxu0 %v662
        %v734 = vpop.f32.mrf.mxu0
        %v735 = vadd.f32 %v682, %v734
        %736 = vmatmul.f32.gmra.mxu0 %v663
        %v737 = vpop.f32.mrf.mxu0
        %v738 = vadd.f32 %v682, %v737
        %739 = vdwg.mxu0
        %v740 = vmax.f32 %v702, 0.0
        %v741 = vmax.f32 %v705, 0.0
        %v742 = vmax.f32 %v708, 0.0
        %v743 = vmax.f32 %v711, 0.0
        %v744 = vmax.f32 %v714, 0.0
        %v745 = vmax.f32 %v717, 0.0
        %v746 = vmax.f32 %v720, 0.0
        %v747 = vmax.f32 %v723, 0.0
        %v748 = vmax.f32 %v726, 0.0
        %v749 = vmax.f32 %v729, 0.0
        %v750 = vmax.f32 %v732, 0.0
        %v751 = vmax.f32 %v735, 0.0
        %v752 = vmax.f32 %v738, 0.0
        %v753 = vld [vmem:[#allocation8] sm:$0xff]
        %v754 = vld [vmem:[#allocation8 + $0x8] sm:$0xff]
        %v755 = vld [vmem:[#allocation8 + $0x10] sm:$0xff]
        %v756 = vld [vmem:[#allocation8 + $0x18] sm:$0xff]
        %v757 = vld [vmem:[#allocation8 + $0x20] sm:$0xff]
        %v758 = vld [vmem:[#allocation8 + $0x28] sm:$0xff]
        %v759 = vld [vmem:[#allocation8 + $0x30] sm:$0xff]
        %v760 = vld [vmem:[#allocation8 + $0x38] sm:$0xff]
        %v761 = vld [vmem:[#allocation8 + $0x40] sm:$0xff]
        %v762 = vld [vmem:[#allocation8 + $0x48] sm:$0xff]
        %v763 = vld [vmem:[#allocation8 + $0x50] sm:$0xff]
        %v764 = vld [vmem:[#allocation8 + $0x58] sm:$0xff]
        %v765 = vld [vmem:[#allocation8 + $0x60] sm:$0xff]
        %v766 = vld [vmem:[#allocation8 + $0x68] sm:$0xff]
        %v767 = vld [vmem:[#allocation8 + $0x70] sm:$0xff]
        %v768 = vld [vmem:[#allocation8 + $0x78] sm:$0xff]
        %v769 = vld [vmem:[%s6] sm:$0x1]
        %v771 = vperm.slane %v769, 0
        %773 = vmatpush.msra.mxu0 %v768
        %774 = vmatpush.msra.mxu0 %v767
        %775 = vmatpush.msra.mxu0 %v766
        %776 = vmatpush.msra.mxu0 %v765
        %777 = vmatpush.msra.mxu0 %v764
        %778 = vmatpush.msra.mxu0 %v763
        %779 = vmatpush.msra.mxu0 %v762
        %780 = vmatpush.msra.mxu0 %v761
        %781 = vmatpush.msra.mxu0 %v760
        %782 = vmatpush.msra.mxu0 %v759
        %783 = vmatpush.msra.mxu0 %v758
        %784 = vmatpush.msra.mxu0 %v757
        %785 = vmatpush.msra.mxu0 %v756
        %786 = vmatpush.msra.mxu0 %v755
        %787 = vmatpush.msra.mxu0 %v754
        %788 = vmatpush.msra.mxu0 %v753
        %789 = vmatmul.f32.gmra.mxu0 %v740
        %v790 = vpop.f32.mrf.mxu0
        %v791 = vadd.f32 %v771, %v790
        %792 = vmatmul.f32.gmra.mxu0 %v741
        %v793 = vpop.f32.mrf.mxu0
        %v794 = vadd.f32 %v771, %v793
        %795 = vmatmul.f32.gmra.mxu0 %v742
        %v796 = vpop.f32.mrf.mxu0
        %v797 = vadd.f32 %v771, %v796
        %798 = vmatmul.f32.gmra.mxu0 %v743
        %v799 = vpop.f32.mrf.mxu0
        %v800 = vadd.f32 %v771, %v799
        %801 = vmatmul.f32.gmra.mxu0 %v744
        %v802 = vpop.f32.mrf.mxu0
        %v803 = vadd.f32 %v771, %v802
        %804 = vmatmul.f32.gmra.mxu0 %v745
        %v805 = vpop.f32.mrf.mxu0
        %v806 = vadd.f32 %v771, %v805
        %807 = vmatmul.f32.gmra.mxu0 %v746
        %v808 = vpop.f32.mrf.mxu0
        %v809 = vadd.f32 %v771, %v808
        %810 = vmatmul.f32.gmra.mxu0 %v747
        %v811 = vpop.f32.mrf.mxu0
        %v812 = vadd.f32 %v771, %v811
        %813 = vmatmul.f32.gmra.mxu0 %v748
        %v814 = vpop.f32.mrf.mxu0
        %v815 = vadd.f32 %v771, %v814
        %816 = vmatmul.f32.gmra.mxu0 %v749
        %v817 = vpop.f32.mrf.mxu0
        %v818 = vadd.f32 %v771, %v817
        %819 = vmatmul.f32.gmra.mxu0 %v750
        %v820 = vpop.f32.mrf.mxu0
        %v821 = vadd.f32 %v771, %v820
        %822 = vmatmul.f32.gmra.mxu0 %v751
        %v823 = vpop.f32.mrf.mxu0
        %v824 = vadd.f32 %v771, %v823
        %825 = vmatmul.f32.gmra.mxu0 %v752
        %v826 = vpop.f32.mrf.mxu0
        %v827 = vadd.f32 %v771, %v826
        %828 = vdwg.mxu0
        %v829 = vadd.f32 %v791, %v651
        %v830 = vadd.f32 %v794, %v652
        %v831 = vadd.f32 %v797, %v653
        %v832 = vadd.f32 %v800, %v654
        %v833 = vadd.f32 %v803, %v655
        %v834 = vadd.f32 %v806, %v656
        %v835 = vadd.f32 %v809, %v657
        %v836 = vadd.f32 %v812, %v658
        %v837 = vadd.f32 %v815, %v659
        %v838 = vadd.f32 %v818, %v660
        %v839 = vadd.f32 %v821, %v661
        %v840 = vadd.f32 %v824, %v662
        %v841 = vadd.f32 %v827, %v663
        %v842 = vmax.f32 %v829, 0.0
        %v843 = vmax.f32 %v830, 0.0
        %v844 = vmax.f32 %v831, 0.0
        %v845 = vmax.f32 %v832, 0.0
        %v846 = vmax.f32 %v833, 0.0
        %v847 = vmax.f32 %v834, 0.0
        %v848 = vmax.f32 %v835, 0.0
        %v849 = vmax.f32 %v836, 0.0
        %v850 = vmax.f32 %v837, 0.0
        %v851 = vmax.f32 %v838, 0.0
        %v852 = vmax.f32 %v839, 0.0
        %v853 = vmax.f32 %v840, 0.0
        %v854 = vmax.f32 %v841, 0.0
        %v855 = vld [vmem:[#allocation10] sm:$0xff]
        %v856 = vld [vmem:[#allocation10 + $0x8] sm:$0xff]
        %v857 = vld [vmem:[#allocation10 + $0x10] sm:$0xff]
        %v858 = vld [vmem:[#allocation10 + $0x18] sm:$0xff]
        %v859 = vld [vmem:[#allocation10 + $0x20] sm:$0xff]
        %v860 = vld [vmem:[#allocation10 + $0x28] sm:$0xff]
        %v861 = vld [vmem:[#allocation10 + $0x30] sm:$0xff]
        %v862 = vld [vmem:[#allocation10 + $0x38] sm:$0xff]
        %v863 = vld [vmem:[#allocation10 + $0x40] sm:$0xff]
        %v864 = vld [vmem:[#allocation10 + $0x48] sm:$0xff]
        %v865 = vld [vmem:[#allocation10 + $0x50] sm:$0xff]
        %v866 = vld [vmem:[#allocation10 + $0x58] sm:$0xff]
        %v867 = vld [vmem:[#allocation10 + $0x60] sm:$0xff]
        %v868 = vld [vmem:[#allocation10 + $0x68] sm:$0xff]
        %v869 = vld [vmem:[#allocation10 + $0x70] sm:$0xff]
        %v870 = vld [vmem:[#allocation10 + $0x78] sm:$0xff]
        %v871 = vld [vmem:[%s8] sm:$0x1]
        %v873 = vperm.slane %v871, 0
        %875 = vmatpush.msra.mxu0 %v870
        %876 = vmatpush.msra.mxu0 %v869
        %877 = vmatpush.msra.mxu0 %v868
        %878 = vmatpush.msra.mxu0 %v867
        %879 = vmatpush.msra.mxu0 %v866
        %880 = vmatpush.msra.mxu0 %v865
        %881 = vmatpush.msra.mxu0 %v864
        %882 = vmatpush.msra.mxu0 %v863
        %883 = vmatpush.msra.mxu0 %v862
        %884 = vmatpush.msra.mxu0 %v861
        %885 = vmatpush.msra.mxu0 %v860
        %886 = vmatpush.msra.mxu0 %v859
        %887 = vmatpush.msra.mxu0 %v858
        %888 = vmatpush.msra.mxu0 %v857
        %889 = vmatpush.msra.mxu0 %v856
        %890 = vmatpush.msra.mxu0 %v855
        %891 = vmatmul.f32.gmra.mxu0 %v842
        %v892 = vpop.f32.mrf.mxu0
        %v893 = vadd.f32 %v873, %v892
        %894 = vmatmul.f32.gmra.mxu0 %v843
        %v895 = vpop.f32.mrf.mxu0
        %v896 = vadd.f32 %v873, %v895
        %897 = vmatmul.f32.gmra.mxu0 %v844
        %v898 = vpop.f32.mrf.mxu0
        %v899 = vadd.f32 %v873, %v898
        %900 = vmatmul.f32.gmra.mxu0 %v845
        %v901 = vpop.f32.mrf.mxu0
        %v902 = vadd.f32 %v873, %v901
        %903 = vmatmul.f32.gmra.mxu0 %v846
        %v904 = vpop.f32.mrf.mxu0
        %v905 = vadd.f32 %v873, %v904
        %906 = vmatmul.f32.gmra.mxu0 %v847
        %v907 = vpop.f32.mrf.mxu0
        %v908 = vadd.f32 %v873, %v907
        %909 = vmatmul.f32.gmra.mxu0 %v848
        %v910 = vpop.f32.mrf.mxu0
        %v911 = vadd.f32 %v873, %v910
        %912 = vmatmul.f32.gmra.mxu0 %v849
        %v913 = vpop.f32.mrf.mxu0
        %v914 = vadd.f32 %v873, %v913
        %915 = vmatmul.f32.gmra.mxu0 %v850
        %v916 = vpop.f32.mrf.mxu0
        %v917 = vadd.f32 %v873, %v916
        %918 = vmatmul.f32.gmra.mxu0 %v851
        %v919 = vpop.f32.mrf.mxu0
        %v920 = vadd.f32 %v873, %v919
        %921 = vmatmul.f32.gmra.mxu0 %v852
        %v922 = vpop.f32.mrf.mxu0
        %v923 = vadd.f32 %v873, %v922
        %924 = vmatmul.f32.gmra.mxu0 %v853
        %v925 = vpop.f32.mrf.mxu0
        %v926 = vadd.f32 %v873, %v925
        %927 = vmatmul.f32.gmra.mxu0 %v854
        %v928 = vpop.f32.mrf.mxu0
        %v929 = vadd.f32 %v873, %v928
        %930 = vdwg.mxu0
        %v931 = vmax.f32 %v893, 0.0
        %v932 = vmax.f32 %v896, 0.0
        %v933 = vmax.f32 %v899, 0.0
        %v934 = vmax.f32 %v902, 0.0
        %v935 = vmax.f32 %v905, 0.0
        %v936 = vmax.f32 %v908, 0.0
        %v937 = vmax.f32 %v911, 0.0
        %v938 = vmax.f32 %v914, 0.0
        %v939 = vmax.f32 %v917, 0.0
        %v940 = vmax.f32 %v920, 0.0
        %v941 = vmax.f32 %v923, 0.0
        %v942 = vmax.f32 %v926, 0.0
        %v943 = vmax.f32 %v929, 0.0
        %v944 = vld [vmem:[#allocation11] sm:$0xff]
        %v945 = vld [vmem:[#allocation11 + $0x8] sm:$0xff]
        %v946 = vld [vmem:[#allocation11 + $0x10] sm:$0xff]
        %v947 = vld [vmem:[#allocation11 + $0x18] sm:$0xff]
        %v948 = vld [vmem:[#allocation11 + $0x20] sm:$0xff]
        %v949 = vld [vmem:[#allocation11 + $0x28] sm:$0xff]
        %v950 = vld [vmem:[#allocation11 + $0x30] sm:$0xff]
        %v951 = vld [vmem:[#allocation11 + $0x38] sm:$0xff]
        %v952 = vld [vmem:[#allocation11 + $0x40] sm:$0xff]
        %v953 = vld [vmem:[#allocation11 + $0x48] sm:$0xff]
        %v954 = vld [vmem:[#allocation11 + $0x50] sm:$0xff]
        %v955 = vld [vmem:[#allocation11 + $0x58] sm:$0xff]
        %v956 = vld [vmem:[#allocation11 + $0x60] sm:$0xff]
        %v957 = vld [vmem:[#allocation11 + $0x68] sm:$0xff]
        %v958 = vld [vmem:[#allocation11 + $0x70] sm:$0xff]
        %v959 = vld [vmem:[#allocation11 + $0x78] sm:$0xff]
        %v960 = vld [vmem:[%s10] sm:$0x1]
        %v962 = vperm.slane %v960, 0
        %964 = vmatpush.msra.mxu0 %v959
        %965 = vmatpush.msra.mxu0 %v958
        %966 = vmatpush.msra.mxu0 %v957
        %967 = vmatpush.msra.mxu0 %v956
        %968 = vmatpush.msra.mxu0 %v955
        %969 = vmatpush.msra.mxu0 %v954
        %970 = vmatpush.msra.mxu0 %v953
        %971 = vmatpush.msra.mxu0 %v952
        %972 = vmatpush.msra.mxu0 %v951
        %973 = vmatpush.msra.mxu0 %v950
        %974 = vmatpush.msra.mxu0 %v949
        %975 = vmatpush.msra.mxu0 %v948
        %976 = vmatpush.msra.mxu0 %v947
        %977 = vmatpush.msra.mxu0 %v946
        %978 = vmatpush.msra.mxu0 %v945
        %979 = vmatpush.msra.mxu0 %v944
        %980 = vmatmul.f32.gmra.mxu0 %v931
        %v981 = vpop.f32.mrf.mxu0
        %v982 = vadd.f32 %v962, %v981
        %983 = vmatmul.f32.gmra.mxu0 %v932
        %v984 = vpop.f32.mrf.mxu0
        %v985 = vadd.f32 %v962, %v984
        %986 = vmatmul.f32.gmra.mxu0 %v933
        %v987 = vpop.f32.mrf.mxu0
        %v988 = vadd.f32 %v962, %v987
        %989 = vmatmul.f32.gmra.mxu0 %v934
        %v990 = vpop.f32.mrf.mxu0
        %v991 = vadd.f32 %v962, %v990
        %992 = vmatmul.f32.gmra.mxu0 %v935
        %v993 = vpop.f32.mrf.mxu0
        %v994 = vadd.f32 %v962, %v993
        %995 = vmatmul.f32.gmra.mxu0 %v936
        %v996 = vpop.f32.mrf.mxu0
        %v997 = vadd.f32 %v962, %v996
        %998 = vmatmul.f32.gmra.mxu0 %v937
        %v999 = vpop.f32.mrf.mxu0
        %v1000 = vadd.f32 %v962, %v999
        %1001 = vmatmul.f32.gmra.mxu0 %v938
        %v1002 = vpop.f32.mrf.mxu0
        %v1003 = vadd.f32 %v962, %v1002
        %1004 = vmatmul.f32.gmra.mxu0 %v939
        %v1005 = vpop.f32.mrf.mxu0
        %v1006 = vadd.f32 %v962, %v1005
        %1007 = vmatmul.f32.gmra.mxu0 %v940
        %v1008 = vpop.f32.mrf.mxu0
        %v1009 = vadd.f32 %v962, %v1008
        %1010 = vmatmul.f32.gmra.mxu0 %v941
        %v1011 = vpop.f32.mrf.mxu0
        %v1012 = vadd.f32 %v962, %v1011
        %1013 = vmatmul.f32.gmra.mxu0 %v942
        %v1014 = vpop.f32.mrf.mxu0
        %v1015 = vadd.f32 %v962, %v1014
        %1016 = vmatmul.f32.gmra.mxu0 %v943
        %v1017 = vpop.f32.mrf.mxu0
        %v1018 = vadd.f32 %v962, %v1017
        %1019 = vdwg.mxu0
        %v1020 = vadd.f32 %v982, %v842
        %v1021 = vadd.f32 %v985, %v843
        %v1022 = vadd.f32 %v988, %v844
        %v1023 = vadd.f32 %v991, %v845
        %v1024 = vadd.f32 %v994, %v846
        %v1025 = vadd.f32 %v997, %v847
        %v1026 = vadd.f32 %v1000, %v848
        %v1027 = vadd.f32 %v1003, %v849
        %v1028 = vadd.f32 %v1006, %v850
        %v1029 = vadd.f32 %v1009, %v851
        %v1030 = vadd.f32 %v1012, %v852
        %v1031 = vadd.f32 %v1015, %v853
        %v1032 = vadd.f32 %v1018, %v854
        %v1033 = vmax.f32 %v1020, 0.0
        %v1034 = vmax.f32 %v1021, 0.0
        %v1035 = vmax.f32 %v1022, 0.0
        %v1036 = vmax.f32 %v1023, 0.0
        %v1037 = vmax.f32 %v1024, 0.0
        %v1038 = vmax.f32 %v1025, 0.0
        %v1039 = vmax.f32 %v1026, 0.0
        %v1040 = vmax.f32 %v1027, 0.0
        %v1041 = vmax.f32 %v1028, 0.0
        %v1042 = vmax.f32 %v1029, 0.0
        %v1043 = vmax.f32 %v1030, 0.0
        %v1044 = vmax.f32 %v1031, 0.0
        %v1045 = vmax.f32 %v1032, 0.0
        %v1046 = vld [vmem:[#allocation13] sm:$0xff]
        %v1047 = vld [vmem:[#allocation13 + $0x8] sm:$0xff]
        %v1048 = vld [vmem:[#allocation13 + $0x10] sm:$0xff]
        %v1049 = vld [vmem:[#allocation13 + $0x18] sm:$0xff]
        %v1050 = vld [vmem:[#allocation13 + $0x20] sm:$0xff]
        %v1051 = vld [vmem:[#allocation13 + $0x28] sm:$0xff]
        %v1052 = vld [vmem:[#allocation13 + $0x30] sm:$0xff]
        %v1053 = vld [vmem:[#allocation13 + $0x38] sm:$0xff]
        %v1054 = vld [vmem:[#allocation13 + $0x40] sm:$0xff]
        %v1055 = vld [vmem:[#allocation13 + $0x48] sm:$0xff]
        %v1056 = vld [vmem:[#allocation13 + $0x50] sm:$0xff]
        %v1057 = vld [vmem:[#allocation13 + $0x58] sm:$0xff]
        %v1058 = vld [vmem:[#allocation13 + $0x60] sm:$0xff]
        %v1059 = vld [vmem:[#allocation13 + $0x68] sm:$0xff]
        %v1060 = vld [vmem:[#allocation13 + $0x70] sm:$0xff]
        %v1061 = vld [vmem:[#allocation13 + $0x78] sm:$0xff]
        %v1062 = vld [vmem:[%s12] sm:$0x1]
        %v1064 = vperm.slane %v1062, 0
        %1066 = vmatpush.msra.mxu0 %v1061
        %1067 = vmatpush.msra.mxu0 %v1060
        %1068 = vmatpush.msra.mxu0 %v1059
        %1069 = vmatpush.msra.mxu0 %v1058
        %1070 = vmatpush.msra.mxu0 %v1057
        %1071 = vmatpush.msra.mxu0 %v1056
        %1072 = vmatpush.msra.mxu0 %v1055
        %1073 = vmatpush.msra.mxu0 %v1054
        %1074 = vmatpush.msra.mxu0 %v1053
        %1075 = vmatpush.msra.mxu0 %v1052
        %1076 = vmatpush.msra.mxu0 %v1051
        %1077 = vmatpush.msra.mxu0 %v1050
        %1078 = vmatpush.msra.mxu0 %v1049
        %1079 = vmatpush.msra.mxu0 %v1048
        %1080 = vmatpush.msra.mxu0 %v1047
        %1081 = vmatpush.msra.mxu0 %v1046
        %1082 = vmatmul.f32.gmra.mxu0 %v1033
        %v1083 = vpop.f32.mrf.mxu0
        %v1084 = vadd.f32 %v1064, %v1083
        %1085 = vmatmul.f32.gmra.mxu0 %v1034
        %v1086 = vpop.f32.mrf.mxu0
        %v1087 = vadd.f32 %v1064, %v1086
        %1088 = vmatmul.f32.gmra.mxu0 %v1035
        %v1089 = vpop.f32.mrf.mxu0
        %v1090 = vadd.f32 %v1064, %v1089
        %1091 = vmatmul.f32.gmra.mxu0 %v1036
        %v1092 = vpop.f32.mrf.mxu0
        %v1093 = vadd.f32 %v1064, %v1092
        %1094 = vmatmul.f32.gmra.mxu0 %v1037
        %v1095 = vpop.f32.mrf.mxu0
        %v1096 = vadd.f32 %v1064, %v1095
        %1097 = vmatmul.f32.gmra.mxu0 %v1038
        %v1098 = vpop.f32.mrf.mxu0
        %v1099 = vadd.f32 %v1064, %v1098
        %1100 = vmatmul.f32.gmra.mxu0 %v1039
        %v1101 = vpop.f32.mrf.mxu0
        %v1102 = vadd.f32 %v1064, %v1101
        %1103 = vmatmul.f32.gmra.mxu0 %v1040
        %v1104 = vpop.f32.mrf.mxu0
        %v1105 = vadd.f32 %v1064, %v1104
        %1106 = vmatmul.f32.gmra.mxu0 %v1041
        %v1107 = vpop.f32.mrf.mxu0
        %v1108 = vadd.f32 %v1064, %v1107
        %1109 = vmatmul.f32.gmra.mxu0 %v1042
        %v1110 = vpop.f32.mrf.mxu0
        %v1111 = vadd.f32 %v1064, %v1110
        %1112 = vmatmul.f32.gmra.mxu0 %v1043
        %v1113 = vpop.f32.mrf.mxu0
        %v1114 = vadd.f32 %v1064, %v1113
        %1115 = vmatmul.f32.gmra.mxu0 %v1044
        %v1116 = vpop.f32.mrf.mxu0
        %v1117 = vadd.f32 %v1064, %v1116
        %1118 = vmatmul.f32.gmra.mxu0 %v1045
        %v1119 = vpop.f32.mrf.mxu0
        %v1120 = vadd.f32 %v1064, %v1119
        %1121 = vdwg.mxu0
        %1122 = vst [vmem:[%s559] sm:$0xff] %v1084
        %1123 = vst [vmem:[%s559 + $0x8] sm:$0xff] %v1087
        %1124 = vst [vmem:[%s559 + $0x10] sm:$0xff] %v1090
        %1125 = vst [vmem:[%s559 + $0x18] sm:$0xff] %v1093
        %1126 = vst [vmem:[%s559 + $0x20] sm:$0xff] %v1096
        %1127 = vst [vmem:[%s559 + $0x28] sm:$0xff] %v1099
        %1128 = vst [vmem:[%s559 + $0x30] sm:$0xff] %v1102
        %1129 = vst [vmem:[%s559 + $0x38] sm:$0xff] %v1105
        %1130 = vst [vmem:[%s559 + $0x40] sm:$0xff] %v1108
        %1131 = vst [vmem:[%s559 + $0x48] sm:$0xff] %v1111
        %1132 = vst [vmem:[%s559 + $0x50] sm:$0xff] %v1114
        %1133 = vst [vmem:[%s559 + $0x58] sm:$0xff] %v1117
        %1134 = vst [vmem:[%s559 + $0x60] sm:$0xff] %v1120
        %s1135 = sand.u32 %s319, 1
        %s1136 = scalar_lea.sflag [#allocation4], %s1135
        %s1137 = sand.u32 %s319, 1
        %s1138 = smul.addr %s1137, 104
        %s1139 = scalar_lea.vmem [#allocation14], %s1138
        // Predicated region
        $region101: #{tpu_custom_call.1} parent=71 // pred_check
          %p1140 = pneg %p329
        $region102: #{tpu_custom_call.1} parent=71 // pred_check_branch
          %1142 = sbr.rel (%p1140) target = $region104
        $region103: #{tpu_custom_call.1} parent=71 // pred_region
          %s1143 = smul.u32 13, %s33
          %1145 = vsyncadd %s1136, 0
          %s1146 = smul.addr %s1143, 8
          %s1147 = scalar_lea.hbm %s13, %s1146
          %s1148 = sshll.u32 %s1139, 4
          %s1149 = int_to_ptr.vmem [resolvable:$true] %s1148
          %s1150 = sshll.u32 %s1147, 4
          %s1151 = int_to_ptr.hbm [resolvable:$true] %s1150
          %1156 = dma.vmem_to_hbm [thread:$0]  %s1149, 1664, %s1151, %s1136, 128, 128, 8
        $region104: #{tpu_custom_call.1} parent=71 // pred_fallthru
          _
      $region72: #{tpu_custom_call.1} parent=5 // pred_fallthru
        _
      %p1157 = scmp.le.s32.totalorder 2, %s28
      // Predicated region
      $region105: #{tpu_custom_call.1} parent=5 // pred_check
        %p1158 = pneg %p1157
      $region106: #{tpu_custom_call.1} parent=5 // pred_check_branch
        %1160 = sbr.rel (%p1158) target = $region108
      $region107: #{tpu_custom_call.1} parent=5 // pred_region
        %s1161 = ssub.s32 %s28, 2
        // Predicated region
        $region109: #{tpu_custom_call.1} parent=107 // pred_check
          %p1162 = pneg %p335
        $region110: #{tpu_custom_call.1} parent=107 // pred_check_branch
          %1164 = sbr.rel (%p1162) target = $region112
        $region111: #{tpu_custom_call.1} parent=107 // pred_region
          %s1165 = sand.u32 %s320, 1
          %s1166 = scalar_lea.sflag [#allocation4], %s1165
          %s1167 = sand.u32 %s320, 1
          %s1168 = smul.addr %s1167, 104
          %s1169 = scalar_lea.vmem [#allocation14], %s1168
          %1171 = dma.done %s1166, 1664
        $region112: #{tpu_custom_call.1} parent=107 // pred_fallthru
          _
      $region108: #{tpu_custom_call.1} parent=5 // pred_fallthru
        _
    $region6: #{tpu_custom_call.1} parent=1 // loop_footer
      %s32 = sadd.s32 1, %s28
    $region7: #{tpu_custom_call.1} parent=1 // loop_footer_branch
      %27 = sbr.rel target = $region3
    $region8: #{tpu_custom_call.1} parent=1 // loop_exit
      _
    %1172 = vsyncpa [#allocation3], 1
    %s1173 = scalar_lea.sflag [#allocation3], 1
    %1174 = vsyncpa %s1173, 1
    %1175 = vsyncpa [#allocation6], 1
    %1176 = vsyncpa [#allocation9], 1
    %1177 = vsyncpa [#allocation12], 1
    %1178 = vsyncpa [#allocation4], 1
    %s1179 = scalar_lea.sflag [#allocation4], 1
    %1180 = vsyncpa %s1179, 1

</llo_original>
